<compile_context>
chip_gen: v7x
topology: tpu7x:2x2x1
jax: 0.10.0
libtpu: 0.0.40
codegen_flags: <defaults>
</compile_context>

<pallas_src>
import functools

import jax
import jax.numpy as jnp
import numpy as np
from jax.experimental import pallas as pl
from jax.experimental.pallas import tpu as pltpu  # noqa: F401  (imported per template)


# ----------------------------------------------------------------------------
# Fused Pallas kernel (built per static shape/config)
# ----------------------------------------------------------------------------
def make_fused_kernel(T, B, H, L):
    """Kernel ref order:
         x_flat (T*B, D)                          time-major flattened input
         per layer l:  wih_t (d_in, 4H), whh_t (H, 4H), b (1, 4H)
         fc_w_t (H, O), fc_b (1, O)
         out (B, O)
       Gate order along the 4H axis is [i, f, o, g] (pre-permuted offline).
    """

    def kernel(*refs):
        x_ref = refs[0]
        fcw_ref = refs[1 + 3 * L]
        fcb_ref = refs[2 + 3 * L]
        out_ref = refs[-1]

        seq = x_ref[...]                                   # (T*B, d_in) f32
        h = jnp.zeros((B, H), jnp.float32)

        for l in range(L):                                 # static unroll over layers
            wih = refs[1 + 3 * l][...]                     # (d_in, 4H)
            whh = refs[2 + 3 * l][...]                     # (H, 4H)
            b = refs[3 + 3 * l][...]                       # (1, 4H)

            # Hoisted input projection: one matmul for all T timesteps,
            # bias folded in here (outside the recurrence).
            gx = jnp.dot(seq, wih, preferred_element_type=jnp.float32) + b  # (T*B, 4H)

            h = jnp.zeros((B, H), jnp.float32)
            c = jnp.zeros((B, H), jnp.float32)
            hs = []
            for t in range(T):                             # static unroll over time
                g = gx[t * B:(t + 1) * B, :] + jnp.dot(
                    h, whh, preferred_element_type=jnp.float32)             # (B, 4H)
                # gate order [i, f, o, g]: one contiguous sigmoid, one tanh
                sig = jax.nn.sigmoid(g[:, : 3 * H])        # (B, 3H)
                i_g = sig[:, 0 * H:1 * H]
                f_g = sig[:, 1 * H:2 * H]
                o_g = sig[:, 2 * H:3 * H]
                g_g = jnp.tanh(g[:, 3 * H:4 * H])

                c = f_g * c + i_g * g_g
                h = o_g * jnp.tanh(c)
                if l < L - 1:
                    hs.append(h)

            if l < L - 1:
                # hidden sequence of this layer feeds the next layer's hoisted
                # projection; stays entirely in VMEM/vregs (no HBM round trip).
                seq = jnp.concatenate(hs, axis=0)          # (T*B, H)

        # Final Linear on the last-timestep hidden state of the top layer.
        out_ref[...] = (
            jnp.dot(h, fcw_ref[...], preferred_element_type=jnp.float32)
            + fcb_ref[...]
        ).astype(out_ref.dtype)

    return kernel


# ----------------------------------------------------------------------------
# Wrapper
# ----------------------------------------------------------------------------
@jax.jit
def model_forward(x, kparams):
    """x: (B, T, D) batch_first, like the PyTorch module. Returns (B, O)."""
    B, T, D = x.shape
    H = kparams["lstm"][0]["whh_t"].shape[0]
    L = len(kparams["lstm"])
    O = kparams["fc_w_t"].shape[1]

    # time-major flattened input: row index = t * B + b  (layout plumbing only)
    x_flat = jnp.transpose(x, (1, 0, 2)).reshape(T * B, D)

    args = [x_flat]
    for layer in kparams["lstm"]:
        args += [layer["wih_t"], layer["whh_t"], layer["b"]]
    args += [kparams["fc_w_t"], kparams["fc_b"]]

    kernel = make_fused_kernel(T, B, H, L)
    return pl.pallas_call(
        kernel,
        out_shape=jax.ShapeDtypeStruct((B, O), jnp.float32),
    )(*args)


# ----------------------------------------------------------------------------
# Parameter init (PyTorch layout) + conversion to kernel layout
# ----------------------------------------------------------------------------
def init_raw_params(key, input_size, hidden_size, num_layers, output_size):
    """PyTorch-style params: w_ih (4H, d_in), w_hh (4H, H), b_ih/b_hh (4H,),
    gate order [i, f, g, o]; fc_w (O, H), fc_b (O,)."""
    bound = 1.0 / np.sqrt(hidden_size)
    layers = []
    for layer in range(num_layers):
        d_in = input_size if layer == 0 else hidden_size
        key, k1, k2, k3, k4 = jax.random.split(key, 5)
        layers.append({
            "w_ih": jax.random.uniform(k1, (4 * hidden_size, d_in), jnp.float32, -bound, bound),
            "w_hh": jax.random.uniform(k2, (4 * hidden_size, hidden_size), jnp.float32, -bound, bound),
            "b_ih": jax.random.uniform(k3, (4 * hidden_size,), jnp.float32, -bound, bound),
            "b_hh": jax.random.uniform(k4, (4 * hidden_size,), jnp.float32, -bound, bound),
        })
    key, k1, k2 = jax.random.split(key, 3)
    fc_w = jax.random.uniform(k1, (output_size, hidden_size), jnp.float32, -bound, bound)
    fc_b = jax.random.uniform(k2, (output_size,), jnp.float32, -bound, bound)
    return {"lstm": layers, "fc_w": fc_w, "fc_b": fc_b}


def _gate_perm(H):
    """PyTorch gate order [i, f, g, o]  ->  kernel gate order [i, f, o, g]."""
    idx = np.arange(4 * H).reshape(4, H)
    return np.concatenate([idx[0], idx[1], idx[3], idx[2]])


def to_kernel_params(raw):
    layers = []
    for layer in raw["lstm"]:
        H = layer["w_hh"].shape[1]
        perm = _gate_perm(H)
        layers.append({
            "wih_t": jnp.asarray(layer["w_ih"])[perm, :].T,                     # (d_in, 4H)
            "whh_t": jnp.asarray(layer["w_hh"])[perm, :].T,                     # (H, 4H)
            "b": (layer["b_ih"] + layer["b_hh"])[perm].reshape(1, 4 * H),       # (1, 4H)
        })
    O = raw["fc_w"].shape[0]
    return {
        "lstm": layers,
        "fc_w_t": jnp.asarray(raw["fc_w"]).T,                                   # (H, O)
        "fc_b": jnp.asarray(raw["fc_b"]).reshape(1, O),                         # (1, O)
    }


# ----------------------------------------------------------------------------
# Pure-JAX reference (mirrors torch.nn.LSTM + Linear, PyTorch gate order)
# ----------------------------------------------------------------------------
def reference_forward(x, raw):
    B, T, D = x.shape
    seq = x
    for layer in raw["lstm"]:
        w_ih, w_hh = layer["w_ih"], layer["w_hh"]
        b = layer["b_ih"] + layer["b_hh"]
        H = w_hh.shape[1]
        h = jnp.zeros((B, H), jnp.float32)
        c = jnp.zeros((B, H), jnp.float32)
        outs = []
        for t in range(T):
            gates = seq[:, t, :] @ w_ih.T + h @ w_hh.T + b
            i_g = jax.nn.sigmoid(gates[:, 0 * H:1 * H])
            f_g = jax.nn.sigmoid(gates[:, 1 * H:2 * H])
            g_g = jnp.tanh(gates[:, 2 * H:3 * H])
            o_g = jax.nn.sigmoid(gates[:, 3 * H:4 * H])
            c = f_g * c + i_g * g_g
            h = o_g * jnp.tanh(c)
            outs.append(h)
        seq = jnp.stack(outs, axis=1)
    return seq[:, -1, :] @ raw["fc_w"].T + raw["fc_b"]


# ----------------------------------------------------------------------------
if __name__ == "__main__":
    B, T, D, H, L, O = 2, 8, 16, 32, 2, 4

    key = jax.random.PRNGKey(0)
    key, kx = jax.random.split(key)
    x = jax.random.normal(kx, (B, T, D), jnp.float32)

    raw = init_raw_params(key, input_size=D, hidden_size=H, num_layers=L, output_size=O)
    kparams = to_kernel_params(raw)

    y = model_forward(x, kparams)
    y = jax.block_until_ready(y)

    y_ref = reference_forward(x, raw)
    np.testing.assert_allclose(np.asarray(y), np.asarray(y_ref), rtol=1e-5, atol=2e-5)

    print("KERNEL_OK")
</pallas_src>

<mosaic_0001>
module attributes {stable_mosaic.version = 11 : i64} {
  func.func @kernel(%arg0: memref<16x16xf32, #tpu.memory_space<vmem>>, %arg1: memref<16x128xf32, #tpu.memory_space<vmem>>, %arg2: memref<32x128xf32, #tpu.memory_space<vmem>>, %arg3: memref<1x128xf32, #tpu.memory_space<vmem>>, %arg4: memref<32x128xf32, #tpu.memory_space<vmem>>, %arg5: memref<32x128xf32, #tpu.memory_space<vmem>>, %arg6: memref<1x128xf32, #tpu.memory_space<vmem>>, %arg7: memref<32x4xf32, #tpu.memory_space<vmem>>, %arg8: memref<1x4xf32, #tpu.memory_space<vmem>>, %arg9: memref<2x4xf32, #tpu.memory_space<vmem>>) attributes {dimension_semantics = [], scalar_prefetch = 0 : i64, scratch_operands = 0 : i64, tpu.core_type = #tpu.core_type<tc>} {
    %c0 = arith.constant 0 : index
    %c0_0 = arith.constant 0 : index
    %0 = vector.load %arg0[%c0, %c0_0] : memref<16x16xf32, #tpu.memory_space<vmem>>, vector<16x16xf32>
    %c0_1 = arith.constant 0 : index
    %c0_2 = arith.constant 0 : index
    %1 = vector.load %arg1[%c0_1, %c0_2] : memref<16x128xf32, #tpu.memory_space<vmem>>, vector<16x128xf32>
    %c0_3 = arith.constant 0 : index
    %c0_4 = arith.constant 0 : index
    %2 = vector.load %arg2[%c0_3, %c0_4] : memref<32x128xf32, #tpu.memory_space<vmem>>, vector<32x128xf32>
    %c0_5 = arith.constant 0 : index
    %c0_6 = arith.constant 0 : index
    %3 = vector.load %arg3[%c0_5, %c0_6] : memref<1x128xf32, #tpu.memory_space<vmem>>, vector<1x128xf32>
    %cst = arith.constant dense<0.000000e+00> : vector<16x128xf32>
    %4 = tpu.matmul %0, %1, %cst {dimension_numbers = #tpu.dot_dimension_numbers<[1], [0], [0], [1], [0, 0, 1, 1], [], []>} : vector<16x16xf32>, vector<16x128xf32>, vector<16x128xf32> -> vector<16x128xf32>
    %5 = vector.broadcast %3 : vector<1x128xf32> to vector<16x128xf32>
    %6 = arith.addf %4, %5 : vector<16x128xf32>
    %cst_7 = arith.constant 0.000000e+00 : f32
    %7 = vector.broadcast %cst_7 : f32 to vector<2x32xf32>
    %cst_8 = arith.constant 0.000000e+00 : f32
    %8 = vector.broadcast %cst_8 : f32 to vector<2x32xf32>
    %9 = vector.extract_strided_slice %6 {offsets = [0, 0], sizes = [2, 128], strides = [1, 1]} : vector<16x128xf32> to vector<2x128xf32>
    %cst_9 = arith.constant dense<0.000000e+00> : vector<2x128xf32>
    %10 = tpu.matmul %7, %2, %cst_9 {dimension_numbers = #tpu.dot_dimension_numbers<[1], [0], [0], [1], [0, 0, 1, 1], [], []>} : vector<2x32xf32>, vector<32x128xf32>, vector<2x128xf32> -> vector<2x128xf32>
    %11 = arith.addf %9, %10 : vector<2x128xf32>
    %12 = vector.extract_strided_slice %11 {offsets = [0, 0], sizes = [2, 96], strides = [1, 1]} : vector<2x128xf32> to vector<2x96xf32>
    %13 = arith.negf %12 : vector<2x96xf32>
    %14 = math.exp %13 : vector<2x96xf32>
    %cst_10 = arith.constant 1.000000e+00 : f32
    %15 = vector.broadcast %cst_10 : f32 to vector<2x96xf32>
    %16 = arith.addf %15, %14 : vector<2x96xf32>
    %17 = arith.divf %15, %16 : vector<2x96xf32>
    %18 = vector.extract_strided_slice %17 {offsets = [0, 0], sizes = [2, 32], strides = [1, 1]} : vector<2x96xf32> to vector<2x32xf32>
    %19 = vector.extract_strided_slice %17 {offsets = [0, 32], sizes = [2, 32], strides = [1, 1]} : vector<2x96xf32> to vector<2x32xf32>
    %20 = vector.extract_strided_slice %17 {offsets = [0, 64], sizes = [2, 32], strides = [1, 1]} : vector<2x96xf32> to vector<2x32xf32>
    %21 = vector.extract_strided_slice %11 {offsets = [0, 96], sizes = [2, 32], strides = [1, 1]} : vector<2x128xf32> to vector<2x32xf32>
    %22 = math.tanh %21 : vector<2x32xf32>
    %23 = arith.mulf %19, %8 : vector<2x32xf32>
    %24 = arith.mulf %18, %22 : vector<2x32xf32>
    %25 = arith.addf %23, %24 : vector<2x32xf32>
    %26 = math.tanh %25 : vector<2x32xf32>
    %27 = arith.mulf %20, %26 : vector<2x32xf32>
    %28 = vector.extract_strided_slice %6 {offsets = [2, 0], sizes = [2, 128], strides = [1, 1]} : vector<16x128xf32> to vector<2x128xf32>
    %cst_11 = arith.constant dense<0.000000e+00> : vector<2x128xf32>
    %29 = tpu.matmul %27, %2, %cst_11 {dimension_numbers = #tpu.dot_dimension_numbers<[1], [0], [0], [1], [0, 0, 1, 1], [], []>} : vector<2x32xf32>, vector<32x128xf32>, vector<2x128xf32> -> vector<2x128xf32>
    %30 = arith.addf %28, %29 : vector<2x128xf32>
    %31 = vector.extract_strided_slice %30 {offsets = [0, 0], sizes = [2, 96], strides = [1, 1]} : vector<2x128xf32> to vector<2x96xf32>
    %32 = arith.negf %31 : vector<2x96xf32>
    %33 = math.exp %32 : vector<2x96xf32>
    %cst_12 = arith.constant 1.000000e+00 : f32
    %34 = vector.broadcast %cst_12 : f32 to vector<2x96xf32>
    %35 = arith.addf %34, %33 : vector<2x96xf32>
    %36 = arith.divf %34, %35 : vector<2x96xf32>
    %37 = vector.extract_strided_slice %36 {offsets = [0, 0], sizes = [2, 32], strides = [1, 1]} : vector<2x96xf32> to vector<2x32xf32>
    %38 = vector.extract_strided_slice %36 {offsets = [0, 32], sizes = [2, 32], strides = [1, 1]} : vector<2x96xf32> to vector<2x32xf32>
    %39 = vector.extract_strided_slice %36 {offsets = [0, 64], sizes = [2, 32], strides = [1, 1]} : vector<2x96xf32> to vector<2x32xf32>
    %40 = vector.extract_strided_slice %30 {offsets = [0, 96], sizes = [2, 32], strides = [1, 1]} : vector<2x128xf32> to vector<2x32xf32>
    %41 = math.tanh %40 : vector<2x32xf32>
    %42 = arith.mulf %38, %25 : vector<2x32xf32>
    %43 = arith.mulf %37, %41 : vector<2x32xf32>
    %44 = arith.addf %42, %43 : vector<2x32xf32>
    %45 = math.tanh %44 : vector<2x32xf32>
    %46 = arith.mulf %39, %45 : vector<2x32xf32>
    %47 = vector.extract_strided_slice %6 {offsets = [4, 0], sizes = [2, 128], strides = [1, 1]} : vector<16x128xf32> to vector<2x128xf32>
    %cst_13 = arith.constant dense<0.000000e+00> : vector<2x128xf32>
    %48 = tpu.matmul %46, %2, %cst_13 {dimension_numbers = #tpu.dot_dimension_numbers<[1], [0], [0], [1], [0, 0, 1, 1], [], []>} : vector<2x32xf32>, vector<32x128xf32>, vector<2x128xf32> -> vector<2x128xf32>
    %49 = arith.addf %47, %48 : vector<2x128xf32>
    %50 = vector.extract_strided_slice %49 {offsets = [0, 0], sizes = [2, 96], strides = [1, 1]} : vector<2x128xf32> to vector<2x96xf32>
    %51 = arith.negf %50 : vector<2x96xf32>
    %52 = math.exp %51 : vector<2x96xf32>
    %cst_14 = arith.constant 1.000000e+00 : f32
    %53 = vector.broadcast %cst_14 : f32 to vector<2x96xf32>
    %54 = arith.addf %53, %52 : vector<2x96xf32>
    %55 = arith.divf %53, %54 : vector<2x96xf32>
    %56 = vector.extract_strided_slice %55 {offsets = [0, 0], sizes = [2, 32], strides = [1, 1]} : vector<2x96xf32> to vector<2x32xf32>
    %57 = vector.extract_strided_slice %55 {offsets = [0, 32], sizes = [2, 32], strides = [1, 1]} : vector<2x96xf32> to vector<2x32xf32>
    %58 = vector.extract_strided_slice %55 {offsets = [0, 64], sizes = [2, 32], strides = [1, 1]} : vector<2x96xf32> to vector<2x32xf32>
    %59 = vector.extract_strided_slice %49 {offsets = [0, 96], sizes = [2, 32], strides = [1, 1]} : vector<2x128xf32> to vector<2x32xf32>
    %60 = math.tanh %59 : vector<2x32xf32>
    %61 = arith.mulf %57, %44 : vector<2x32xf32>
    %62 = arith.mulf %56, %60 : vector<2x32xf32>
    %63 = arith.addf %61, %62 : vector<2x32xf32>
    %64 = math.tanh %63 : vector<2x32xf32>
    %65 = arith.mulf %58, %64 : vector<2x32xf32>
    %66 = vector.extract_strided_slice %6 {offsets = [6, 0], sizes = [2, 128], strides = [1, 1]} : vector<16x128xf32> to vector<2x128xf32>
    %cst_15 = arith.constant dense<0.000000e+00> : vector<2x128xf32>
    %67 = tpu.matmul %65, %2, %cst_15 {dimension_numbers = #tpu.dot_dimension_numbers<[1], [0], [0], [1], [0, 0, 1, 1], [], []>} : vector<2x32xf32>, vector<32x128xf32>, vector<2x128xf32> -> vector<2x128xf32>
    %68 = arith.addf %66, %67 : vector<2x128xf32>
    %69 = vector.extract_strided_slice %68 {offsets = [0, 0], sizes = [2, 96], strides = [1, 1]} : vector<2x128xf32> to vector<2x96xf32>
    %70 = arith.negf %69 : vector<2x96xf32>
    %71 = math.exp %70 : vector<2x96xf32>
    %cst_16 = arith.constant 1.000000e+00 : f32
    %72 = vector.broadcast %cst_16 : f32 to vector<2x96xf32>
    %73 = arith.addf %72, %71 : vector<2x96xf32>
    %74 = arith.divf %72, %73 : vector<2x96xf32>
    %75 = vector.extract_strided_slice %74 {offsets = [0, 0], sizes = [2, 32], strides = [1, 1]} : vector<2x96xf32> to vector<2x32xf32>
    %76 = vector.extract_strided_slice %74 {offsets = [0, 32], sizes = [2, 32], strides = [1, 1]} : vector<2x96xf32> to vector<2x32xf32>
    %77 = vector.extract_strided_slice %74 {offsets = [0, 64], sizes = [2, 32], strides = [1, 1]} : vector<2x96xf32> to vector<2x32xf32>
    %78 = vector.extract_strided_slice %68 {offsets = [0, 96], sizes = [2, 32], strides = [1, 1]} : vector<2x128xf32> to vector<2x32xf32>
    %79 = math.tanh %78 : vector<2x32xf32>
    %80 = arith.mulf %76, %63 : vector<2x32xf32>
    %81 = arith.mulf %75, %79 : vector<2x32xf32>
    %82 = arith.addf %80, %81 : vector<2x32xf32>
    %83 = math.tanh %82 : vector<2x32xf32>
    %84 = arith.mulf %77, %83 : vector<2x32xf32>
    %85 = vector.extract_strided_slice %6 {offsets = [8, 0], sizes = [2, 128], strides = [1, 1]} : vector<16x128xf32> to vector<2x128xf32>
    %cst_17 = arith.constant dense<0.000000e+00> : vector<2x128xf32>
    %86 = tpu.matmul %84, %2, %cst_17 {dimension_numbers = #tpu.dot_dimension_numbers<[1], [0], [0], [1], [0, 0, 1, 1], [], []>} : vector<2x32xf32>, vector<32x128xf32>, vector<2x128xf32> -> vector<2x128xf32>
    %87 = arith.addf %85, %86 : vector<2x128xf32>
    %88 = vector.extract_strided_slice %87 {offsets = [0, 0], sizes = [2, 96], strides = [1, 1]} : vector<2x128xf32> to vector<2x96xf32>
    %89 = arith.negf %88 : vector<2x96xf32>
    %90 = math.exp %89 : vector<2x96xf32>
    %cst_18 = arith.constant 1.000000e+00 : f32
    %91 = vector.broadcast %cst_18 : f32 to vector<2x96xf32>
    %92 = arith.addf %91, %90 : vector<2x96xf32>
    %93 = arith.divf %91, %92 : vector<2x96xf32>
    %94 = vector.extract_strided_slice %93 {offsets = [0, 0], sizes = [2, 32], strides = [1, 1]} : vector<2x96xf32> to vector<2x32xf32>
    %95 = vector.extract_strided_slice %93 {offsets = [0, 32], sizes = [2, 32], strides = [1, 1]} : vector<2x96xf32> to vector<2x32xf32>
    %96 = vector.extract_strided_slice %93 {offsets = [0, 64], sizes = [2, 32], strides = [1, 1]} : vector<2x96xf32> to vector<2x32xf32>
    %97 = vector.extract_strided_slice %87 {offsets = [0, 96], sizes = [2, 32], strides = [1, 1]} : vector<2x128xf32> to vector<2x32xf32>
    %98 = math.tanh %97 : vector<2x32xf32>
    %99 = arith.mulf %95, %82 : vector<2x32xf32>
    %100 = arith.mulf %94, %98 : vector<2x32xf32>
    %101 = arith.addf %99, %100 : vector<2x32xf32>
    %102 = math.tanh %101 : vector<2x32xf32>
    %103 = arith.mulf %96, %102 : vector<2x32xf32>
    %104 = vector.extract_strided_slice %6 {offsets = [10, 0], sizes = [2, 128], strides = [1, 1]} : vector<16x128xf32> to vector<2x128xf32>
    %cst_19 = arith.constant dense<0.000000e+00> : vector<2x128xf32>
    %105 = tpu.matmul %103, %2, %cst_19 {dimension_numbers = #tpu.dot_dimension_numbers<[1], [0], [0], [1], [0, 0, 1, 1], [], []>} : vector<2x32xf32>, vector<32x128xf32>, vector<2x128xf32> -> vector<2x128xf32>
    %106 = arith.addf %104, %105 : vector<2x128xf32>
    %107 = vector.extract_strided_slice %106 {offsets = [0, 0], sizes = [2, 96], strides = [1, 1]} : vector<2x128xf32> to vector<2x96xf32>
    %108 = arith.negf %107 : vector<2x96xf32>
    %109 = math.exp %108 : vector<2x96xf32>
    %cst_20 = arith.constant 1.000000e+00 : f32
    %110 = vector.broadcast %cst_20 : f32 to vector<2x96xf32>
    %111 = arith.addf %110, %109 : vector<2x96xf32>
    %112 = arith.divf %110, %111 : vector<2x96xf32>
    %113 = vector.extract_strided_slice %112 {offsets = [0, 0], sizes = [2, 32], strides = [1, 1]} : vector<2x96xf32> to vector<2x32xf32>
    %114 = vector.extract_strided_slice %112 {offsets = [0, 32], sizes = [2, 32], strides = [1, 1]} : vector<2x96xf32> to vector<2x32xf32>
    %115 = vector.extract_strided_slice %112 {offsets = [0, 64], sizes = [2, 32], strides = [1, 1]} : vector<2x96xf32> to vector<2x32xf32>
    %116 = vector.extract_strided_slice %106 {offsets = [0, 96], sizes = [2, 32], strides = [1, 1]} : vector<2x128xf32> to vector<2x32xf32>
    %117 = math.tanh %116 : vector<2x32xf32>
    %118 = arith.mulf %114, %101 : vector<2x32xf32>
    %119 = arith.mulf %113, %117 : vector<2x32xf32>
    %120 = arith.addf %118, %119 : vector<2x32xf32>
    %121 = math.tanh %120 : vector<2x32xf32>
    %122 = arith.mulf %115, %121 : vector<2x32xf32>
    %123 = vector.extract_strided_slice %6 {offsets = [12, 0], sizes = [2, 128], strides = [1, 1]} : vector<16x128xf32> to vector<2x128xf32>
    %cst_21 = arith.constant dense<0.000000e+00> : vector<2x128xf32>
    %124 = tpu.matmul %122, %2, %cst_21 {dimension_numbers = #tpu.dot_dimension_numbers<[1], [0], [0], [1], [0, 0, 1, 1], [], []>} : vector<2x32xf32>, vector<32x128xf32>, vector<2x128xf32> -> vector<2x128xf32>
    %125 = arith.addf %123, %124 : vector<2x128xf32>
    %126 = vector.extract_strided_slice %125 {offsets = [0, 0], sizes = [2, 96], strides = [1, 1]} : vector<2x128xf32> to vector<2x96xf32>
    %127 = arith.negf %126 : vector<2x96xf32>
    %128 = math.exp %127 : vector<2x96xf32>
    %cst_22 = arith.constant 1.000000e+00 : f32
    %129 = vector.broadcast %cst_22 : f32 to vector<2x96xf32>
    %130 = arith.addf %129, %128 : vector<2x96xf32>
    %131 = arith.divf %129, %130 : vector<2x96xf32>
    %132 = vector.extract_strided_slice %131 {offsets = [0, 0], sizes = [2, 32], strides = [1, 1]} : vector<2x96xf32> to vector<2x32xf32>
    %133 = vector.extract_strided_slice %131 {offsets = [0, 32], sizes = [2, 32], strides = [1, 1]} : vector<2x96xf32> to vector<2x32xf32>
    %134 = vector.extract_strided_slice %131 {offsets = [0, 64], sizes = [2, 32], strides = [1, 1]} : vector<2x96xf32> to vector<2x32xf32>
    %135 = vector.extract_strided_slice %125 {offsets = [0, 96], sizes = [2, 32], strides = [1, 1]} : vector<2x128xf32> to vector<2x32xf32>
    %136 = math.tanh %135 : vector<2x32xf32>
    %137 = arith.mulf %133, %120 : vector<2x32xf32>
    %138 = arith.mulf %132, %136 : vector<2x32xf32>
    %139 = arith.addf %137, %138 : vector<2x32xf32>
    %140 = math.tanh %139 : vector<2x32xf32>
    %141 = arith.mulf %134, %140 : vector<2x32xf32>
    %142 = vector.extract_strided_slice %6 {offsets = [14, 0], sizes = [2, 128], strides = [1, 1]} : vector<16x128xf32> to vector<2x128xf32>
    %cst_23 = arith.constant dense<0.000000e+00> : vector<2x128xf32>
    %143 = tpu.matmul %141, %2, %cst_23 {dimension_numbers = #tpu.dot_dimension_numbers<[1], [0], [0], [1], [0, 0, 1, 1], [], []>} : vector<2x32xf32>, vector<32x128xf32>, vector<2x128xf32> -> vector<2x128xf32>
    %144 = arith.addf %142, %143 : vector<2x128xf32>
    %145 = vector.extract_strided_slice %144 {offsets = [0, 0], sizes = [2, 96], strides = [1, 1]} : vector<2x128xf32> to vector<2x96xf32>
    %146 = arith.negf %145 : vector<2x96xf32>
    %147 = math.exp %146 : vector<2x96xf32>
    %cst_24 = arith.constant 1.000000e+00 : f32
    %148 = vector.broadcast %cst_24 : f32 to vector<2x96xf32>
    %149 = arith.addf %148, %147 : vector<2x96xf32>
    %150 = arith.divf %148, %149 : vector<2x96xf32>
    %151 = vector.extract_strided_slice %150 {offsets = [0, 0], sizes = [2, 32], strides = [1, 1]} : vector<2x96xf32> to vector<2x32xf32>
    %152 = vector.extract_strided_slice %150 {offsets = [0, 32], sizes = [2, 32], strides = [1, 1]} : vector<2x96xf32> to vector<2x32xf32>
    %153 = vector.extract_strided_slice %150 {offsets = [0, 64], sizes = [2, 32], strides = [1, 1]} : vector<2x96xf32> to vector<2x32xf32>
    %154 = vector.extract_strided_slice %144 {offsets = [0, 96], sizes = [2, 32], strides = [1, 1]} : vector<2x128xf32> to vector<2x32xf32>
    %155 = math.tanh %154 : vector<2x32xf32>
    %156 = arith.mulf %152, %139 : vector<2x32xf32>
    %157 = arith.mulf %151, %155 : vector<2x32xf32>
    %158 = arith.addf %156, %157 : vector<2x32xf32>
    %159 = math.tanh %158 : vector<2x32xf32>
    %160 = arith.mulf %153, %159 : vector<2x32xf32>
    %161 = tpu.concatenate %27, %46, %65, %84, %103, %122, %141, %160 in 0 : vector<2x32xf32>, vector<2x32xf32>, vector<2x32xf32>, vector<2x32xf32>, vector<2x32xf32>, vector<2x32xf32>, vector<2x32xf32>, vector<2x32xf32> -> vector<16x32xf32>
    %c0_25 = arith.constant 0 : index
    %c0_26 = arith.constant 0 : index
    %162 = vector.load %arg4[%c0_25, %c0_26] : memref<32x128xf32, #tpu.memory_space<vmem>>, vector<32x128xf32>
    %c0_27 = arith.constant 0 : index
    %c0_28 = arith.constant 0 : index
    %163 = vector.load %arg5[%c0_27, %c0_28] : memref<32x128xf32, #tpu.memory_space<vmem>>, vector<32x128xf32>
    %c0_29 = arith.constant 0 : index
    %c0_30 = arith.constant 0 : index
    %164 = vector.load %arg6[%c0_29, %c0_30] : memref<1x128xf32, #tpu.memory_space<vmem>>, vector<1x128xf32>
    %cst_31 = arith.constant dense<0.000000e+00> : vector<16x128xf32>
    %165 = tpu.matmul %161, %162, %cst_31 {dimension_numbers = #tpu.dot_dimension_numbers<[1], [0], [0], [1], [0, 0, 1, 1], [], []>} : vector<16x32xf32>, vector<32x128xf32>, vector<16x128xf32> -> vector<16x128xf32>
    %166 = vector.broadcast %164 : vector<1x128xf32> to vector<16x128xf32>
    %167 = arith.addf %165, %166 : vector<16x128xf32>
    %cst_32 = arith.constant 0.000000e+00 : f32
    %168 = vector.broadcast %cst_32 : f32 to vector<2x32xf32>
    %cst_33 = arith.constant 0.000000e+00 : f32
    %169 = vector.broadcast %cst_33 : f32 to vector<2x32xf32>
    %170 = vector.extract_strided_slice %167 {offsets = [0, 0], sizes = [2, 128], strides = [1, 1]} : vector<16x128xf32> to vector<2x128xf32>
    %cst_34 = arith.constant dense<0.000000e+00> : vector<2x128xf32>
    %171 = tpu.matmul %168, %163, %cst_34 {dimension_numbers = #tpu.dot_dimension_numbers<[1], [0], [0], [1], [0, 0, 1, 1], [], []>} : vector<2x32xf32>, vector<32x128xf32>, vector<2x128xf32> -> vector<2x128xf32>
    %172 = arith.addf %170, %171 : vector<2x128xf32>
    %173 = vector.extract_strided_slice %172 {offsets = [0, 0], sizes = [2, 96], strides = [1, 1]} : vector<2x128xf32> to vector<2x96xf32>
    %174 = arith.negf %173 : vector<2x96xf32>
    %175 = math.exp %174 : vector<2x96xf32>
    %cst_35 = arith.constant 1.000000e+00 : f32
    %176 = vector.broadcast %cst_35 : f32 to vector<2x96xf32>
    %177 = arith.addf %176, %175 : vector<2x96xf32>
    %178 = arith.divf %176, %177 : vector<2x96xf32>
    %179 = vector.extract_strided_slice %178 {offsets = [0, 0], sizes = [2, 32], strides = [1, 1]} : vector<2x96xf32> to vector<2x32xf32>
    %180 = vector.extract_strided_slice %178 {offsets = [0, 32], sizes = [2, 32], strides = [1, 1]} : vector<2x96xf32> to vector<2x32xf32>
    %181 = vector.extract_strided_slice %178 {offsets = [0, 64], sizes = [2, 32], strides = [1, 1]} : vector<2x96xf32> to vector<2x32xf32>
    %182 = vector.extract_strided_slice %172 {offsets = [0, 96], sizes = [2, 32], strides = [1, 1]} : vector<2x128xf32> to vector<2x32xf32>
    %183 = math.tanh %182 : vector<2x32xf32>
    %184 = arith.mulf %180, %169 : vector<2x32xf32>
    %185 = arith.mulf %179, %183 : vector<2x32xf32>
    %186 = arith.addf %184, %185 : vector<2x32xf32>
    %187 = math.tanh %186 : vector<2x32xf32>
    %188 = arith.mulf %181, %187 : vector<2x32xf32>
    %189 = vector.extract_strided_slice %167 {offsets = [2, 0], sizes = [2, 128], strides = [1, 1]} : vector<16x128xf32> to vector<2x128xf32>
    %cst_36 = arith.constant dense<0.000000e+00> : vector<2x128xf32>
    %190 = tpu.matmul %188, %163, %cst_36 {dimension_numbers = #tpu.dot_dimension_numbers<[1], [0], [0], [1], [0, 0, 1, 1], [], []>} : vector<2x32xf32>, vector<32x128xf32>, vector<2x128xf32> -> vector<2x128xf32>
    %191 = arith.addf %189, %190 : vector<2x128xf32>
    %192 = vector.extract_strided_slice %191 {offsets = [0, 0], sizes = [2, 96], strides = [1, 1]} : vector<2x128xf32> to vector<2x96xf32>
    %193 = arith.negf %192 : vector<2x96xf32>
    %194 = math.exp %193 : vector<2x96xf32>
    %cst_37 = arith.constant 1.000000e+00 : f32
    %195 = vector.broadcast %cst_37 : f32 to vector<2x96xf32>
    %196 = arith.addf %195, %194 : vector<2x96xf32>
    %197 = arith.divf %195, %196 : vector<2x96xf32>
    %198 = vector.extract_strided_slice %197 {offsets = [0, 0], sizes = [2, 32], strides = [1, 1]} : vector<2x96xf32> to vector<2x32xf32>
    %199 = vector.extract_strided_slice %197 {offsets = [0, 32], sizes = [2, 32], strides = [1, 1]} : vector<2x96xf32> to vector<2x32xf32>
    %200 = vector.extract_strided_slice %197 {offsets = [0, 64], sizes = [2, 32], strides = [1, 1]} : vector<2x96xf32> to vector<2x32xf32>
    %201 = vector.extract_strided_slice %191 {offsets = [0, 96], sizes = [2, 32], strides = [1, 1]} : vector<2x128xf32> to vector<2x32xf32>
    %202 = math.tanh %201 : vector<2x32xf32>
    %203 = arith.mulf %199, %186 : vector<2x32xf32>
    %204 = arith.mulf %198, %202 : vector<2x32xf32>
    %205 = arith.addf %203, %204 : vector<2x32xf32>
    %206 = math.tanh %205 : vector<2x32xf32>
    %207 = arith.mulf %200, %206 : vector<2x32xf32>
    %208 = vector.extract_strided_slice %167 {offsets = [4, 0], sizes = [2, 128], strides = [1, 1]} : vector<16x128xf32> to vector<2x128xf32>
    %cst_38 = arith.constant dense<0.000000e+00> : vector<2x128xf32>
    %209 = tpu.matmul %207, %163, %cst_38 {dimension_numbers = #tpu.dot_dimension_numbers<[1], [0], [0], [1], [0, 0, 1, 1], [], []>} : vector<2x32xf32>, vector<32x128xf32>, vector<2x128xf32> -> vector<2x128xf32>
    %210 = arith.addf %208, %209 : vector<2x128xf32>
    %211 = vector.extract_strided_slice %210 {offsets = [0, 0], sizes = [2, 96], strides = [1, 1]} : vector<2x128xf32> to vector<2x96xf32>
    %212 = arith.negf %211 : vector<2x96xf32>
    %213 = math.exp %212 : vector<2x96xf32>
    %cst_39 = arith.constant 1.000000e+00 : f32
    %214 = vector.broadcast %cst_39 : f32 to vector<2x96xf32>
    %215 = arith.addf %214, %213 : vector<2x96xf32>
    %216 = arith.divf %214, %215 : vector<2x96xf32>
    %217 = vector.extract_strided_slice %216 {offsets = [0, 0], sizes = [2, 32], strides = [1, 1]} : vector<2x96xf32> to vector<2x32xf32>
    %218 = vector.extract_strided_slice %216 {offsets = [0, 32], sizes = [2, 32], strides = [1, 1]} : vector<2x96xf32> to vector<2x32xf32>
    %219 = vector.extract_strided_slice %216 {offsets = [0, 64], sizes = [2, 32], strides = [1, 1]} : vector<2x96xf32> to vector<2x32xf32>
    %220 = vector.extract_strided_slice %210 {offsets = [0, 96], sizes = [2, 32], strides = [1, 1]} : vector<2x128xf32> to vector<2x32xf32>
    %221 = math.tanh %220 : vector<2x32xf32>
    %222 = arith.mulf %218, %205 : vector<2x32xf32>
    %223 = arith.mulf %217, %221 : vector<2x32xf32>
    %224 = arith.addf %222, %223 : vector<2x32xf32>
    %225 = math.tanh %224 : vector<2x32xf32>
    %226 = arith.mulf %219, %225 : vector<2x32xf32>
    %227 = vector.extract_strided_slice %167 {offsets = [6, 0], sizes = [2, 128], strides = [1, 1]} : vector<16x128xf32> to vector<2x128xf32>
    %cst_40 = arith.constant dense<0.000000e+00> : vector<2x128xf32>
    %228 = tpu.matmul %226, %163, %cst_40 {dimension_numbers = #tpu.dot_dimension_numbers<[1], [0], [0], [1], [0, 0, 1, 1], [], []>} : vector<2x32xf32>, vector<32x128xf32>, vector<2x128xf32> -> vector<2x128xf32>
    %229 = arith.addf %227, %228 : vector<2x128xf32>
    %230 = vector.extract_strided_slice %229 {offsets = [0, 0], sizes = [2, 96], strides = [1, 1]} : vector<2x128xf32> to vector<2x96xf32>
    %231 = arith.negf %230 : vector<2x96xf32>
    %232 = math.exp %231 : vector<2x96xf32>
    %cst_41 = arith.constant 1.000000e+00 : f32
    %233 = vector.broadcast %cst_41 : f32 to vector<2x96xf32>
    %234 = arith.addf %233, %232 : vector<2x96xf32>
    %235 = arith.divf %233, %234 : vector<2x96xf32>
    %236 = vector.extract_strided_slice %235 {offsets = [0, 0], sizes = [2, 32], strides = [1, 1]} : vector<2x96xf32> to vector<2x32xf32>
    %237 = vector.extract_strided_slice %235 {offsets = [0, 32], sizes = [2, 32], strides = [1, 1]} : vector<2x96xf32> to vector<2x32xf32>
    %238 = vector.extract_strided_slice %235 {offsets = [0, 64], sizes = [2, 32], strides = [1, 1]} : vector<2x96xf32> to vector<2x32xf32>
    %239 = vector.extract_strided_slice %229 {offsets = [0, 96], sizes = [2, 32], strides = [1, 1]} : vector<2x128xf32> to vector<2x32xf32>
    %240 = math.tanh %239 : vector<2x32xf32>
    %241 = arith.mulf %237, %224 : vector<2x32xf32>
    %242 = arith.mulf %236, %240 : vector<2x32xf32>
    %243 = arith.addf %241, %242 : vector<2x32xf32>
    %244 = math.tanh %243 : vector<2x32xf32>
    %245 = arith.mulf %238, %244 : vector<2x32xf32>
    %246 = vector.extract_strided_slice %167 {offsets = [8, 0], sizes = [2, 128], strides = [1, 1]} : vector<16x128xf32> to vector<2x128xf32>
    %cst_42 = arith.constant dense<0.000000e+00> : vector<2x128xf32>
    %247 = tpu.matmul %245, %163, %cst_42 {dimension_numbers = #tpu.dot_dimension_numbers<[1], [0], [0], [1], [0, 0, 1, 1], [], []>} : vector<2x32xf32>, vector<32x128xf32>, vector<2x128xf32> -> vector<2x128xf32>
    %248 = arith.addf %246, %247 : vector<2x128xf32>
    %249 = vector.extract_strided_slice %248 {offsets = [0, 0], sizes = [2, 96], strides = [1, 1]} : vector<2x128xf32> to vector<2x96xf32>
    %250 = arith.negf %249 : vector<2x96xf32>
    %251 = math.exp %250 : vector<2x96xf32>
    %cst_43 = arith.constant 1.000000e+00 : f32
    %252 = vector.broadcast %cst_43 : f32 to vector<2x96xf32>
    %253 = arith.addf %252, %251 : vector<2x96xf32>
    %254 = arith.divf %252, %253 : vector<2x96xf32>
    %255 = vector.extract_strided_slice %254 {offsets = [0, 0], sizes = [2, 32], strides = [1, 1]} : vector<2x96xf32> to vector<2x32xf32>
    %256 = vector.extract_strided_slice %254 {offsets = [0, 32], sizes = [2, 32], strides = [1, 1]} : vector<2x96xf32> to vector<2x32xf32>
    %257 = vector.extract_strided_slice %254 {offsets = [0, 64], sizes = [2, 32], strides = [1, 1]} : vector<2x96xf32> to vector<2x32xf32>
    %258 = vector.extract_strided_slice %248 {offsets = [0, 96], sizes = [2, 32], strides = [1, 1]} : vector<2x128xf32> to vector<2x32xf32>
    %259 = math.tanh %258 : vector<2x32xf32>
    %260 = arith.mulf %256, %243 : vector<2x32xf32>
    %261 = arith.mulf %255, %259 : vector<2x32xf32>
    %262 = arith.addf %260, %261 : vector<2x32xf32>
    %263 = math.tanh %262 : vector<2x32xf32>
    %264 = arith.mulf %257, %263 : vector<2x32xf32>
    %265 = vector.extract_strided_slice %167 {offsets = [10, 0], sizes = [2, 128], strides = [1, 1]} : vector<16x128xf32> to vector<2x128xf32>
    %cst_44 = arith.constant dense<0.000000e+00> : vector<2x128xf32>
    %266 = tpu.matmul %264, %163, %cst_44 {dimension_numbers = #tpu.dot_dimension_numbers<[1], [0], [0], [1], [0, 0, 1, 1], [], []>} : vector<2x32xf32>, vector<32x128xf32>, vector<2x128xf32> -> vector<2x128xf32>
    %267 = arith.addf %265, %266 : vector<2x128xf32>
    %268 = vector.extract_strided_slice %267 {offsets = [0, 0], sizes = [2, 96], strides = [1, 1]} : vector<2x128xf32> to vector<2x96xf32>
    %269 = arith.negf %268 : vector<2x96xf32>
    %270 = math.exp %269 : vector<2x96xf32>
    %cst_45 = arith.constant 1.000000e+00 : f32
    %271 = vector.broadcast %cst_45 : f32 to vector<2x96xf32>
    %272 = arith.addf %271, %270 : vector<2x96xf32>
    %273 = arith.divf %271, %272 : vector<2x96xf32>
    %274 = vector.extract_strided_slice %273 {offsets = [0, 0], sizes = [2, 32], strides = [1, 1]} : vector<2x96xf32> to vector<2x32xf32>
    %275 = vector.extract_strided_slice %273 {offsets = [0, 32], sizes = [2, 32], strides = [1, 1]} : vector<2x96xf32> to vector<2x32xf32>
    %276 = vector.extract_strided_slice %273 {offsets = [0, 64], sizes = [2, 32], strides = [1, 1]} : vector<2x96xf32> to vector<2x32xf32>
    %277 = vector.extract_strided_slice %267 {offsets = [0, 96], sizes = [2, 32], strides = [1, 1]} : vector<2x128xf32> to vector<2x32xf32>
    %278 = math.tanh %277 : vector<2x32xf32>
    %279 = arith.mulf %275, %262 : vector<2x32xf32>
    %280 = arith.mulf %274, %278 : vector<2x32xf32>
    %281 = arith.addf %279, %280 : vector<2x32xf32>
    %282 = math.tanh %281 : vector<2x32xf32>
    %283 = arith.mulf %276, %282 : vector<2x32xf32>
    %284 = vector.extract_strided_slice %167 {offsets = [12, 0], sizes = [2, 128], strides = [1, 1]} : vector<16x128xf32> to vector<2x128xf32>
    %cst_46 = arith.constant dense<0.000000e+00> : vector<2x128xf32>
    %285 = tpu.matmul %283, %163, %cst_46 {dimension_numbers = #tpu.dot_dimension_numbers<[1], [0], [0], [1], [0, 0, 1, 1], [], []>} : vector<2x32xf32>, vector<32x128xf32>, vector<2x128xf32> -> vector<2x128xf32>
    %286 = arith.addf %284, %285 : vector<2x128xf32>
    %287 = vector.extract_strided_slice %286 {offsets = [0, 0], sizes = [2, 96], strides = [1, 1]} : vector<2x128xf32> to vector<2x96xf32>
    %288 = arith.negf %287 : vector<2x96xf32>
    %289 = math.exp %288 : vector<2x96xf32>
    %cst_47 = arith.constant 1.000000e+00 : f32
    %290 = vector.broadcast %cst_47 : f32 to vector<2x96xf32>
    %291 = arith.addf %290, %289 : vector<2x96xf32>
    %292 = arith.divf %290, %291 : vector<2x96xf32>
    %293 = vector.extract_strided_slice %292 {offsets = [0, 0], sizes = [2, 32], strides = [1, 1]} : vector<2x96xf32> to vector<2x32xf32>
    %294 = vector.extract_strided_slice %292 {offsets = [0, 32], sizes = [2, 32], strides = [1, 1]} : vector<2x96xf32> to vector<2x32xf32>
    %295 = vector.extract_strided_slice %292 {offsets = [0, 64], sizes = [2, 32], strides = [1, 1]} : vector<2x96xf32> to vector<2x32xf32>
    %296 = vector.extract_strided_slice %286 {offsets = [0, 96], sizes = [2, 32], strides = [1, 1]} : vector<2x128xf32> to vector<2x32xf32>
    %297 = math.tanh %296 : vector<2x32xf32>
    %298 = arith.mulf %294, %281 : vector<2x32xf32>
    %299 = arith.mulf %293, %297 : vector<2x32xf32>
    %300 = arith.addf %298, %299 : vector<2x32xf32>
    %301 = math.tanh %300 : vector<2x32xf32>
    %302 = arith.mulf %295, %301 : vector<2x32xf32>
    %303 = vector.extract_strided_slice %167 {offsets = [14, 0], sizes = [2, 128], strides = [1, 1]} : vector<16x128xf32> to vector<2x128xf32>
    %cst_48 = arith.constant dense<0.000000e+00> : vector<2x128xf32>
    %304 = tpu.matmul %302, %163, %cst_48 {dimension_numbers = #tpu.dot_dimension_numbers<[1], [0], [0], [1], [0, 0, 1, 1], [], []>} : vector<2x32xf32>, vector<32x128xf32>, vector<2x128xf32> -> vector<2x128xf32>
    %305 = arith.addf %303, %304 : vector<2x128xf32>
    %306 = vector.extract_strided_slice %305 {offsets = [0, 0], sizes = [2, 96], strides = [1, 1]} : vector<2x128xf32> to vector<2x96xf32>
    %307 = arith.negf %306 : vector<2x96xf32>
    %308 = math.exp %307 : vector<2x96xf32>
    %cst_49 = arith.constant 1.000000e+00 : f32
    %309 = vector.broadcast %cst_49 : f32 to vector<2x96xf32>
    %310 = arith.addf %309, %308 : vector<2x96xf32>
    %311 = arith.divf %309, %310 : vector<2x96xf32>
    %312 = vector.extract_strided_slice %311 {offsets = [0, 0], sizes = [2, 32], strides = [1, 1]} : vector<2x96xf32> to vector<2x32xf32>
    %313 = vector.extract_strided_slice %311 {offsets = [0, 32], sizes = [2, 32], strides = [1, 1]} : vector<2x96xf32> to vector<2x32xf32>
    %314 = vector.extract_strided_slice %311 {offsets = [0, 64], sizes = [2, 32], strides = [1, 1]} : vector<2x96xf32> to vector<2x32xf32>
    %315 = vector.extract_strided_slice %305 {offsets = [0, 96], sizes = [2, 32], strides = [1, 1]} : vector<2x128xf32> to vector<2x32xf32>
    %316 = math.tanh %315 : vector<2x32xf32>
    %317 = arith.mulf %313, %300 : vector<2x32xf32>
    %318 = arith.mulf %312, %316 : vector<2x32xf32>
    %319 = arith.addf %317, %318 : vector<2x32xf32>
    %320 = math.tanh %319 : vector<2x32xf32>
    %321 = arith.mulf %314, %320 : vector<2x32xf32>
    %c0_50 = arith.constant 0 : index
    %c0_51 = arith.constant 0 : index
    %322 = vector.load %arg7[%c0_50, %c0_51] : memref<32x4xf32, #tpu.memory_space<vmem>>, vector<32x4xf32>
    %cst_52 = arith.constant dense<0.000000e+00> : vector<2x4xf32>
    %323 = tpu.matmul %321, %322, %cst_52 {dimension_numbers = #tpu.dot_dimension_numbers<[1], [0], [0], [1], [0, 0, 1, 1], [], []>} : vector<2x32xf32>, vector<32x4xf32>, vector<2x4xf32> -> vector<2x4xf32>
    %c0_53 = arith.constant 0 : index
    %c0_54 = arith.constant 0 : index
    %324 = vector.load %arg8[%c0_53, %c0_54] : memref<1x4xf32, #tpu.memory_space<vmem>>, vector<1x4xf32>
    %325 = vector.broadcast %324 : vector<1x4xf32> to vector<2x4xf32>
    %326 = arith.addf %323, %325 : vector<2x4xf32>
    %c0_55 = arith.constant 0 : index
    %c0_56 = arith.constant 0 : index
    %327 = vector.load %arg9[%c0_55, %c0_56] : memref<2x4xf32, #tpu.memory_space<vmem>>, vector<2x4xf32>
    tpu.vector_store %arg9[%c0_55, %c0_56], %326 {strides = array<i32>} : memref<2x4xf32, #tpu.memory_space<vmem>>, vector<2x4xf32>,
    return
  }
}

</mosaic_0001>

<llo_original>
// kernel: model_forward.1
$region0: #{model_forward.1}
  #allocation0 [shape = 'u32[]', space=smem, size = 0x4, offset = 0x4, fixed_abs, tag = 'smem constant byte address 0x4 - core index']
  #allocation1 [shape = 'u32[144,128]{1,0:T(1,128)}', space=vmem, size = 0x12000, scoped, tag = 'internal scratch']
  %s0 = inlined_call_operand.vmem [shape: f32[16,16], index: 0, kind: input, shape index: {}]
  %s1 = inlined_call_operand.hbm [shape: f32[16,128], index: 1, kind: input, shape index: {}]
  %s2 = inlined_call_operand.vmem [shape: f32[32,128], index: 2, kind: input, shape index: {}]
  %s3 = inlined_call_operand.vmem [shape: f32[1,128], index: 3, kind: input, shape index: {}]
  %s4 = inlined_call_operand.vmem [shape: f32[32,128], index: 4, kind: input, shape index: {}]
  %s5 = inlined_call_operand.vmem [shape: f32[32,128], index: 5, kind: input, shape index: {}]
  %s6 = inlined_call_operand.vmem [shape: f32[1,128], index: 6, kind: input, shape index: {}]
  %s7 = inlined_call_operand.vmem [shape: f32[32,4], index: 7, kind: input, shape index: {}]
  %s8 = inlined_call_operand.hbm [shape: f32[1,4], index: 8, kind: input, shape index: {}]
  %s9 = inlined_call_operand.hbm [shape: f32[2,4], index: 9, kind: output, shape index: {}]
  %s10 = sld [smem:[#allocation0]]
  $region54: #{model_forward.1} parent=0
    _
  %s12 = ssub.s32 1, %s10
  %s13 = scalar_select 0, %s12, %s10
  $region1: #{model_forward.1} parent=0
    #allocation2 [shape = 'u8[8192]{0}', space=vmem, size = 0x2000, scoped, tag = 'input window, operand 1, single buffered']
    #allocation3 [shape = 's32[1]{0}', space=sflag, size = 0x4, scoped, tag = 'scoped memory for model_forward.1']
    #allocation4 [shape = 's32[1]{0}', space=sflag, size = 0x4, scoped, tag = 'scoped memory for model_forward.1']
    #allocation5 [shape = 'u8[512]{0}', space=vmem, size = 0x400, scoped, tag = 'input window, operand 8, single buffered']
    #allocation6 [shape = 's32[1]{0}', space=sflag, size = 0x4, scoped, tag = 'scoped memory for model_forward.1']
    #allocation7 [shape = 'u8[1024]{0}', space=vmem, size = 0x400, scoped, tag = 'output window, operand 0, single buffered']
    %14 = vsyncpa [#allocation3], 0
    %15 = vsyncpa [#allocation6], 0
    %16 = vsyncpa [#allocation4], 0
    // Predicated region
    $region2: #{model_forward.1} parent=1 // pred_check
      _
    $region3: #{model_forward.1} parent=1 // pred_check_branch
      %18 = sbr.rel (0) target = $region5
    $region4: #{model_forward.1} parent=1 // pred_region
      _
    $region5: #{model_forward.1} parent=1 // pred_fallthru
      _
    // Predicated region
    $region6: #{model_forward.1} parent=1 // pred_check
      _
    $region7: #{model_forward.1} parent=1 // pred_check_branch
      %20 = sbr.rel (0) target = $region9
    $region8: #{model_forward.1} parent=1 // pred_region
      %s22 = ssub.s32 256, 256
      %23 = vsyncadd [#allocation3], %s22
      %s24 = sshll.u32 [#allocation2], 4
      %s25 = int_to_ptr.vmem [resolvable:$true] %s24
      %30 = dma.hbm_to_vmem [thread:$0]  %s1, 256, %s25, [#allocation3], 128, 128, 8
    $region9: #{model_forward.1} parent=1 // pred_fallthru
      _
    // Predicated region
    $region10: #{model_forward.1} parent=1 // pred_check
      _
    $region11: #{model_forward.1} parent=1 // pred_check_branch
      %32 = sbr.rel (0) target = $region13
    $region12: #{model_forward.1} parent=1 // pred_region
      _
    $region13: #{model_forward.1} parent=1 // pred_fallthru
      _
    // Predicated region
    $region14: #{model_forward.1} parent=1 // pred_check
      _
    $region15: #{model_forward.1} parent=1 // pred_check_branch
      %34 = sbr.rel (0) target = $region17
    $region16: #{model_forward.1} parent=1 // pred_region
      _
    $region17: #{model_forward.1} parent=1 // pred_fallthru
      _
    // Predicated region
    $region18: #{model_forward.1} parent=1 // pred_check
      _
    $region19: #{model_forward.1} parent=1 // pred_check_branch
      %36 = sbr.rel (0) target = $region21
    $region20: #{model_forward.1} parent=1 // pred_region
      _
    $region21: #{model_forward.1} parent=1 // pred_fallthru
      _
    // Predicated region
    $region22: #{model_forward.1} parent=1 // pred_check
      _
    $region23: #{model_forward.1} parent=1 // pred_check_branch
      %38 = sbr.rel (0) target = $region25
    $region24: #{model_forward.1} parent=1 // pred_region
      _
    $region25: #{model_forward.1} parent=1 // pred_fallthru
      _
    // Predicated region
    $region26: #{model_forward.1} parent=1 // pred_check
      _
    $region27: #{model_forward.1} parent=1 // pred_check_branch
      %40 = sbr.rel (0) target = $region29
    $region28: #{model_forward.1} parent=1 // pred_region
      _
    $region29: #{model_forward.1} parent=1 // pred_fallthru
      _
    // Predicated region
    $region30: #{model_forward.1} parent=1 // pred_check
      _
    $region31: #{model_forward.1} parent=1 // pred_check_branch
      %42 = sbr.rel (0) target = $region33
    $region32: #{model_forward.1} parent=1 // pred_region
      _
    $region33: #{model_forward.1} parent=1 // pred_fallthru
      _
    // Predicated region
    $region34: #{model_forward.1} parent=1 // pred_check
      _
    $region35: #{model_forward.1} parent=1 // pred_check_branch
      %44 = sbr.rel (0) target = $region37
    $region36: #{model_forward.1} parent=1 // pred_region
      %s46 = ssub.s32 16, 16
      %47 = vsyncadd [#allocation6], %s46
      %s49 = sshll.u32 [#allocation5], 4
      %s50 = int_to_ptr.vmem [resolvable:$true] %s49
      %52 = dma.hbm_to_vmem [thread:$0]  %s8, 16, %s50, [#allocation6]
    $region37: #{model_forward.1} parent=1 // pred_fallthru
      _
    // Predicated region
    $region38: #{model_forward.1} parent=1 // pred_check
      _
    $region39: #{model_forward.1} parent=1 // pred_check_branch
      %54 = sbr.rel (0) target = $region41
    $region40: #{model_forward.1} parent=1 // pred_region
      %55 = dma.done [#allocation3], 256
    $region41: #{model_forward.1} parent=1 // pred_fallthru
      _
    // Predicated region
    $region42: #{model_forward.1} parent=1 // pred_check
      _
    $region43: #{model_forward.1} parent=1 // pred_check_branch
      %57 = sbr.rel (0) target = $region45
    $region44: #{model_forward.1} parent=1 // pred_region
      %58 = dma.done [#allocation6], 16
    $region45: #{model_forward.1} parent=1 // pred_fallthru
      _
    %v59 = vld [vmem:[%s0] sm:$0xff]
    %v60 = vld [vmem:[%s0 + $0x8] sm:$0xff]
    %v61 = vld [vmem:[#allocation2] sm:$0xff]
    %v62 = vld [vmem:[#allocation2 + $0x8] sm:$0xff]
    %v63 = vld [vmem:[%s2] sm:$0xff]
    %v64 = vld [vmem:[%s2 + $0x8] sm:$0xff]
    %v65 = vld [vmem:[%s2 + $0x10] sm:$0xff]
    %v66 = vld [vmem:[%s2 + $0x18] sm:$0xff]
    %v67 = vld [vmem:[%s3] sm:$0x1]
    %v69 = vlaneseq
    %v70 = vshrl.u32 %v69, 7
    %v71 = vsub.s32 0, %v70
    %v72 = vrot.slane %v67, %v71
    %vm74 = vcmask 130048
    %v76 = vsel %vm74, %v59, 0
    %v79 = vsel %vm74, %v60, 0
    %81 = vmatprep.subr.mxu0 0.0
    %82 = vmatpush1.msra.mxu0 %v61
    %83 = vmatprep.subr.mxu0 0.0
    %84 = vmatpush1.msra.mxu0 %v62
    %85 = vmatprep.subr.mxu0 0.0
    %86 = vmatpush1.msra.mxu0 0.0
    %87 = vmatprep.subr.mxu0 0.0
    %88 = vmatpush1.msra.mxu0 0.0
    %89 = vmatprep.subr.mxu0 0.0
    %90 = vmatpush1.msra.mxu0 0.0
    %91 = vmatprep.subr.mxu0 0.0
    %92 = vmatpush1.msra.mxu0 0.0
    %93 = vmatprep.subr.mxu0 0.0
    %94 = vmatpush1.msra.mxu0 0.0
    %95 = vmatprep.subr.mxu0 0.0
    %96 = vmatpush1.msra.mxu0 0.0
    %97 = vmatprep.subr.mxu0 0.0
    %98 = vmatpush1.msra.mxu0 0.0
    %99 = vmatprep.subr.mxu0 0.0
    %100 = vmatpush1.msra.mxu0 0.0
    %101 = vmatprep.subr.mxu0 0.0
    %102 = vmatpush1.msra.mxu0 0.0
    %103 = vmatprep.subr.mxu0 0.0
    %104 = vmatpush1.msra.mxu0 0.0
    %105 = vmatprep.subr.mxu0 0.0
    %106 = vmatpush1.msra.mxu0 0.0
    %107 = vmatprep.subr.mxu0 0.0
    %108 = vmatpush1.msra.mxu0 0.0
    %109 = vmatprep.subr.mxu0 0.0
    %110 = vmatpush1.msra.mxu0 0.0
    %111 = vmatprep.subr.mxu0 0.0
    %112 = vmatpush1.msra.mxu0 0.0
    %113 = vmatprep.subr.mxu0 0.0
    %114 = vmatpush1.msra.mxu0 0.0
    %115 = vmatprep.subr.mxu0 0.0
    %116 = vmatpush1.msra.mxu0 0.0
    %117 = vmatprep.subr.mxu0 0.0
    %118 = vmatpush1.msra.mxu0 0.0
    %119 = vmatprep.subr.mxu0 0.0
    %120 = vmatpush1.msra.mxu0 0.0
    %121 = vmatprep.subr.mxu0 0.0
    %122 = vmatpush1.msra.mxu0 0.0
    %123 = vmatprep.subr.mxu0 0.0
    %124 = vmatpush1.msra.mxu0 0.0
    %125 = vmatprep.subr.mxu0 0.0
    %126 = vmatpush1.msra.mxu0 0.0
    %127 = vmatprep.subr.mxu0 0.0
    %128 = vmatpush1.msra.mxu0 0.0
    %129 = vmatprep.subr.mxu0 0.0
    %130 = vmatpush1.msra.mxu0 0.0
    %131 = vmatprep.subr.mxu0 0.0
    %132 = vmatpush1.msra.mxu0 0.0
    %133 = vmatprep.subr.mxu0 0.0
    %134 = vmatpush1.msra.mxu0 0.0
    %135 = vmatprep.subr.mxu0 0.0
    %136 = vmatpush1.msra.mxu0 0.0
    %137 = vmatprep.subr.mxu0 0.0
    %138 = vmatpush1.msra.mxu0 0.0
    %139 = vmatprep.subr.mxu0 0.0
    %140 = vmatpush1.msra.mxu0 0.0
    %141 = vmatprep.subr.mxu0 0.0
    %142 = vmatpush1.msra.mxu0 0.0
    %143 = vmatprep.subr.mxu0 0.0
    %144 = vmatpush1.msra.mxu0 0.0
    %145 = vmatprep.mubr.f32.mxu0 0.0
    %146 = vmatmul.mubr.f32.gmra.mrb[0].mxu0 %v76
    %v147 = vpop.f32.mrb[0].mxu0
    %v148 = vadd.f32 %v72, %v147
    %v149 = vpop.f32.mrb[0].mxu0
    %150 = vmatprep.mubr.f32.mxu0 0.0
    %151 = vmatmul.mubr.f32.gmra.mrb[0].mxu0 %v79
    %v152 = vpop.f32.mrb[0].mxu0
    %v153 = vadd.f32 %v72, %v152
    %v154 = vpop.f32.mrb[0].mxu0
    %155 = vdwg.mxu0
    %vm156 = vcmask 261120
    %v158 = vsel %vm156, 0.0, 0
    %160 = vmatprep.subr.mxu0 0.0
    %161 = vmatpush1.msra.mxu0 %v63
    %162 = vmatprep.subr.mxu0 0.0
    %163 = vmatpush1.msra.mxu0 %v64
    %164 = vmatprep.subr.mxu0 0.0
    %165 = vmatpush1.msra.mxu0 %v65
    %166 = vmatprep.subr.mxu0 0.0
    %167 = vmatpush1.msra.mxu0 %v66
    %168 = vmatprep.subr.mxu0 0.0
    %169 = vmatpush1.msra.mxu0 0.0
    %170 = vmatprep.subr.mxu0 0.0
    %171 = vmatpush1.msra.mxu0 0.0
    %172 = vmatprep.subr.mxu0 0.0
    %173 = vmatpush1.msra.mxu0 0.0
    %174 = vmatprep.subr.mxu0 0.0
    %175 = vmatpush1.msra.mxu0 0.0
    %176 = vmatprep.subr.mxu0 0.0
    %177 = vmatpush1.msra.mxu0 0.0
    %178 = vmatprep.subr.mxu0 0.0
    %179 = vmatpush1.msra.mxu0 0.0
    %180 = vmatprep.subr.mxu0 0.0
    %181 = vmatpush1.msra.mxu0 0.0
    %182 = vmatprep.subr.mxu0 0.0
    %183 = vmatpush1.msra.mxu0 0.0
    %184 = vmatprep.subr.mxu0 0.0
    %185 = vmatpush1.msra.mxu0 0.0
    %186 = vmatprep.subr.mxu0 0.0
    %187 = vmatpush1.msra.mxu0 0.0
    %188 = vmatprep.subr.mxu0 0.0
    %189 = vmatpush1.msra.mxu0 0.0
    %190 = vmatprep.subr.mxu0 0.0
    %191 = vmatpush1.msra.mxu0 0.0
    %192 = vmatprep.subr.mxu0 0.0
    %193 = vmatpush1.msra.mxu0 0.0
    %194 = vmatprep.subr.mxu0 0.0
    %195 = vmatpush1.msra.mxu0 0.0
    %196 = vmatprep.subr.mxu0 0.0
    %197 = vmatpush1.msra.mxu0 0.0
    %198 = vmatprep.subr.mxu0 0.0
    %199 = vmatpush1.msra.mxu0 0.0
    %200 = vmatprep.subr.mxu0 0.0
    %201 = vmatpush1.msra.mxu0 0.0
    %202 = vmatprep.subr.mxu0 0.0
    %203 = vmatpush1.msra.mxu0 0.0
    %204 = vmatprep.subr.mxu0 0.0
    %205 = vmatpush1.msra.mxu0 0.0
    %206 = vmatprep.subr.mxu0 0.0
    %207 = vmatpush1.msra.mxu0 0.0
    %208 = vmatprep.subr.mxu0 0.0
    %209 = vmatpush1.msra.mxu0 0.0
    %210 = vmatprep.subr.mxu0 0.0
    %211 = vmatpush1.msra.mxu0 0.0
    %212 = vmatprep.subr.mxu0 0.0
    %213 = vmatpush1.msra.mxu0 0.0
    %214 = vmatprep.subr.mxu0 0.0
    %215 = vmatpush1.msra.mxu0 0.0
    %216 = vmatprep.subr.mxu0 0.0
    %217 = vmatpush1.msra.mxu0 0.0
    %218 = vmatprep.subr.mxu0 0.0
    %219 = vmatpush1.msra.mxu0 0.0
    %220 = vmatprep.subr.mxu0 0.0
    %221 = vmatpush1.msra.mxu0 0.0
    %222 = vmatprep.subr.mxu0 0.0
    %223 = vmatpush1.msra.mxu0 0.0
    %224 = vmatprep.mubr.f32.mxu0 0.0
    %225 = vmatmul.mubr.f32.gmra.mrb[0].mxu0 %v158
    %v226 = vpop.f32.mrb[0].mxu0
    %v227 = vadd.f32 0.0, %v226
    %v228 = vpop.f32.mrb[0].mxu0
    %229 = vdwg.mxu0
    %v230 = vadd.f32 %v148, %v227
    %v231 = vxor.u32 %v230, 2147483648
    %v232 = vmul.f32 %v231, 1.442695
    %v233 = vpow.pop %v232
    %v234 = vadd.f32 %v233, 1.0
    %v235 = vrcp.pop %v234
    %v236 = vmul.f32 1.0, %v235
    %v237 = vtanh.pop %v230
    %v238 = vmul.f32 %v236, 0.0
    %240 = vrot.lane.b32.xlu0 %v237, 32
    %v241 = vpop.permute.xlu0 %240
    %v243 = vmul.f32 %v236, %v241
    %245 = vrot.lane.b32.xlu0 %v243, 32
    %v246 = vpop.permute.xlu0 %245
    %v248 = vadd.f32 %v238, %v246
    %v249 = vtanh.pop %v248
    %251 = vrot.lane.b32.xlu0 %v249, 32
    %v252 = vpop.permute.xlu0 %251
    %v254 = vmul.f32 %v236, %v252
    %256 = vrot.lane.b32.xlu0 %v254, 64
    %v257 = vpop.permute.xlu0 %256
    %v258 = vsel %vm156, %v257, 0
    %260 = vmatprep.subr.mxu0 0.0
    %261 = vmatpush1.msra.mxu0 %v63
    %262 = vmatprep.subr.mxu0 0.0
    %263 = vmatpush1.msra.mxu0 %v64
    %264 = vmatprep.subr.mxu0 0.0
    %265 = vmatpush1.msra.mxu0 %v65
    %266 = vmatprep.subr.mxu0 0.0
    %267 = vmatpush1.msra.mxu0 %v66
    %268 = vmatprep.subr.mxu0 0.0
    %269 = vmatpush1.msra.mxu0 0.0
    %270 = vmatprep.subr.mxu0 0.0
    %271 = vmatpush1.msra.mxu0 0.0
    %272 = vmatprep.subr.mxu0 0.0
    %273 = vmatpush1.msra.mxu0 0.0
    %274 = vmatprep.subr.mxu0 0.0
    %275 = vmatpush1.msra.mxu0 0.0
    %276 = vmatprep.subr.mxu0 0.0
    %277 = vmatpush1.msra.mxu0 0.0
    %278 = vmatprep.subr.mxu0 0.0
    %279 = vmatpush1.msra.mxu0 0.0
    %280 = vmatprep.subr.mxu0 0.0
    %281 = vmatpush1.msra.mxu0 0.0
    %282 = vmatprep.subr.mxu0 0.0
    %283 = vmatpush1.msra.mxu0 0.0
    %284 = vmatprep.subr.mxu0 0.0
    %285 = vmatpush1.msra.mxu0 0.0
    %286 = vmatprep.subr.mxu0 0.0
    %287 = vmatpush1.msra.mxu0 0.0
    %288 = vmatprep.subr.mxu0 0.0
    %289 = vmatpush1.msra.mxu0 0.0
    %290 = vmatprep.subr.mxu0 0.0
    %291 = vmatpush1.msra.mxu0 0.0
    %292 = vmatprep.subr.mxu0 0.0
    %293 = vmatpush1.msra.mxu0 0.0
    %294 = vmatprep.subr.mxu0 0.0
    %295 = vmatpush1.msra.mxu0 0.0
    %296 = vmatprep.subr.mxu0 0.0
    %297 = vmatpush1.msra.mxu0 0.0
    %298 = vmatprep.subr.mxu0 0.0
    %299 = vmatpush1.msra.mxu0 0.0
    %300 = vmatprep.subr.mxu0 0.0
    %301 = vmatpush1.msra.mxu0 0.0
    %302 = vmatprep.subr.mxu0 0.0
    %303 = vmatpush1.msra.mxu0 0.0
    %304 = vmatprep.subr.mxu0 0.0
    %305 = vmatpush1.msra.mxu0 0.0
    %306 = vmatprep.subr.mxu0 0.0
    %307 = vmatpush1.msra.mxu0 0.0
    %308 = vmatprep.subr.mxu0 0.0
    %309 = vmatpush1.msra.mxu0 0.0
    %310 = vmatprep.subr.mxu0 0.0
    %311 = vmatpush1.msra.mxu0 0.0
    %312 = vmatprep.subr.mxu0 0.0
    %313 = vmatpush1.msra.mxu0 0.0
    %314 = vmatprep.subr.mxu0 0.0
    %315 = vmatpush1.msra.mxu0 0.0
    %316 = vmatprep.subr.mxu0 0.0
    %317 = vmatpush1.msra.mxu0 0.0
    %318 = vmatprep.subr.mxu0 0.0
    %319 = vmatpush1.msra.mxu0 0.0
    %320 = vmatprep.subr.mxu0 0.0
    %321 = vmatpush1.msra.mxu0 0.0
    %322 = vmatprep.subr.mxu0 0.0
    %323 = vmatpush1.msra.mxu0 0.0
    %324 = vmatprep.mubr.f32.mxu0 0.0
    %325 = vmatmul.mubr.f32.gmra.mrb[0].mxu0 %v258
    %v326 = vpop.f32.mrb[0].mxu0
    %v327 = vadd.f32 0.0, %v326
    %v328 = vpop.f32.mrb[0].mxu0
    %329 = vdwg.mxu0
    %v331 = vrot.slane %v327, 6
    %v333 = vadd.f32 %v148, %v331
    %v334 = vxor.u32 %v333, 2147483648
    %v335 = vmul.f32 %v334, 1.442695
    %v336 = vpow.pop %v335
    %v337 = vadd.f32 %v336, 1.0
    %v338 = vrcp.pop %v337
    %v339 = vmul.f32 1.0, %v338
    %v340 = vtanh.pop %v333
    %v342 = vrot.slane %v248, 6
    %v344 = vmul.f32 %v339, %v342
    %346 = vrot.lane.b32.xlu0 %v340, 32
    %v347 = vpop.permute.xlu0 %346
    %v349 = vmul.f32 %v339, %v347
    %351 = vrot.lane.b32.xlu0 %v349, 32
    %v352 = vpop.permute.xlu0 %351
    %v354 = vadd.f32 %v344, %v352
    %v355 = vtanh.pop %v354
    %357 = vrot.lane.b32.xlu0 %v355, 32
    %v358 = vpop.permute.xlu0 %357
    %v360 = vmul.f32 %v339, %v358
    %v362 = vrot.slane %v360, 2
    %363 = vrot.lane.b32.xlu0 %v362, 64
    %v364 = vpop.permute.xlu0 %363
    %v365 = vsel %vm156, %v364, 0
    %367 = vmatprep.subr.mxu0 0.0
    %368 = vmatpush1.msra.mxu0 %v63
    %369 = vmatprep.subr.mxu0 0.0
    %370 = vmatpush1.msra.mxu0 %v64
    %371 = vmatprep.subr.mxu0 0.0
    %372 = vmatpush1.msra.mxu0 %v65
    %373 = vmatprep.subr.mxu0 0.0
    %374 = vmatpush1.msra.mxu0 %v66
    %375 = vmatprep.subr.mxu0 0.0
    %376 = vmatpush1.msra.mxu0 0.0
    %377 = vmatprep.subr.mxu0 0.0
    %378 = vmatpush1.msra.mxu0 0.0
    %379 = vmatprep.subr.mxu0 0.0
    %380 = vmatpush1.msra.mxu0 0.0
    %381 = vmatprep.subr.mxu0 0.0
    %382 = vmatpush1.msra.mxu0 0.0
    %383 = vmatprep.subr.mxu0 0.0
    %384 = vmatpush1.msra.mxu0 0.0
    %385 = vmatprep.subr.mxu0 0.0
    %386 = vmatpush1.msra.mxu0 0.0
    %387 = vmatprep.subr.mxu0 0.0
    %388 = vmatpush1.msra.mxu0 0.0
    %389 = vmatprep.subr.mxu0 0.0
    %390 = vmatpush1.msra.mxu0 0.0
    %391 = vmatprep.subr.mxu0 0.0
    %392 = vmatpush1.msra.mxu0 0.0
    %393 = vmatprep.subr.mxu0 0.0
    %394 = vmatpush1.msra.mxu0 0.0
    %395 = vmatprep.subr.mxu0 0.0
    %396 = vmatpush1.msra.mxu0 0.0
    %397 = vmatprep.subr.mxu0 0.0
    %398 = vmatpush1.msra.mxu0 0.0
    %399 = vmatprep.subr.mxu0 0.0
    %400 = vmatpush1.msra.mxu0 0.0
    %401 = vmatprep.subr.mxu0 0.0
    %402 = vmatpush1.msra.mxu0 0.0
    %403 = vmatprep.subr.mxu0 0.0
    %404 = vmatpush1.msra.mxu0 0.0
    %405 = vmatprep.subr.mxu0 0.0
    %406 = vmatpush1.msra.mxu0 0.0
    %407 = vmatprep.subr.mxu0 0.0
    %408 = vmatpush1.msra.mxu0 0.0
    %409 = vmatprep.subr.mxu0 0.0
    %410 = vmatpush1.msra.mxu0 0.0
    %411 = vmatprep.subr.mxu0 0.0
    %412 = vmatpush1.msra.mxu0 0.0
    %413 = vmatprep.subr.mxu0 0.0
    %414 = vmatpush1.msra.mxu0 0.0
    %415 = vmatprep.subr.mxu0 0.0
    %416 = vmatpush1.msra.mxu0 0.0
    %417 = vmatprep.subr.mxu0 0.0
    %418 = vmatpush1.msra.mxu0 0.0
    %419 = vmatprep.subr.mxu0 0.0
    %420 = vmatpush1.msra.mxu0 0.0
    %421 = vmatprep.subr.mxu0 0.0
    %422 = vmatpush1.msra.mxu0 0.0
    %423 = vmatprep.subr.mxu0 0.0
    %424 = vmatpush1.msra.mxu0 0.0
    %425 = vmatprep.subr.mxu0 0.0
    %426 = vmatpush1.msra.mxu0 0.0
    %427 = vmatprep.subr.mxu0 0.0
    %428 = vmatpush1.msra.mxu0 0.0
    %429 = vmatprep.subr.mxu0 0.0
    %430 = vmatpush1.msra.mxu0 0.0
    %431 = vmatprep.mubr.f32.mxu0 0.0
    %432 = vmatmul.mubr.f32.gmra.mrb[0].mxu0 %v365
    %v433 = vpop.f32.mrb[0].mxu0
    %v434 = vadd.f32 0.0, %v433
    %v435 = vpop.f32.mrb[0].mxu0
    %436 = vdwg.mxu0
    %v438 = vrot.slane %v434, 4
    %v440 = vadd.f32 %v148, %v438
    %v441 = vxor.u32 %v440, 2147483648
    %v442 = vmul.f32 %v441, 1.442695
    %v443 = vpow.pop %v442
    %v444 = vadd.f32 %v443, 1.0
    %v445 = vrcp.pop %v444
    %v446 = vmul.f32 1.0, %v445
    %v447 = vtanh.pop %v440
    %v449 = vrot.slane %v354, 6
    %v451 = vmul.f32 %v446, %v449
    %453 = vrot.lane.b32.xlu0 %v447, 32
    %v454 = vpop.permute.xlu0 %453
    %v456 = vmul.f32 %v446, %v454
    %458 = vrot.lane.b32.xlu0 %v456, 32
    %v459 = vpop.permute.xlu0 %458
    %v461 = vadd.f32 %v451, %v459
    %v462 = vtanh.pop %v461
    %464 = vrot.lane.b32.xlu0 %v462, 32
    %v465 = vpop.permute.xlu0 %464
    %v467 = vmul.f32 %v446, %v465
    %v469 = vrot.slane %v467, 4
    %470 = vrot.lane.b32.xlu0 %v469, 64
    %v471 = vpop.permute.xlu0 %470
    %v472 = vsel %vm156, %v471, 0
    %474 = vmatprep.subr.mxu0 0.0
    %475 = vmatpush1.msra.mxu0 %v63
    %476 = vmatprep.subr.mxu0 0.0
    %477 = vmatpush1.msra.mxu0 %v64
    %478 = vmatprep.subr.mxu0 0.0
    %479 = vmatpush1.msra.mxu0 %v65
    %480 = vmatprep.subr.mxu0 0.0
    %481 = vmatpush1.msra.mxu0 %v66
    %482 = vmatprep.subr.mxu0 0.0
    %483 = vmatpush1.msra.mxu0 0.0
    %484 = vmatprep.subr.mxu0 0.0
    %485 = vmatpush1.msra.mxu0 0.0
    %486 = vmatprep.subr.mxu0 0.0
    %487 = vmatpush1.msra.mxu0 0.0
    %488 = vmatprep.subr.mxu0 0.0
    %489 = vmatpush1.msra.mxu0 0.0
    %490 = vmatprep.subr.mxu0 0.0
    %491 = vmatpush1.msra.mxu0 0.0
    %492 = vmatprep.subr.mxu0 0.0
    %493 = vmatpush1.msra.mxu0 0.0
    %494 = vmatprep.subr.mxu0 0.0
    %495 = vmatpush1.msra.mxu0 0.0
    %496 = vmatprep.subr.mxu0 0.0
    %497 = vmatpush1.msra.mxu0 0.0
    %498 = vmatprep.subr.mxu0 0.0
    %499 = vmatpush1.msra.mxu0 0.0
    %500 = vmatprep.subr.mxu0 0.0
    %501 = vmatpush1.msra.mxu0 0.0
    %502 = vmatprep.subr.mxu0 0.0
    %503 = vmatpush1.msra.mxu0 0.0
    %504 = vmatprep.subr.mxu0 0.0
    %505 = vmatpush1.msra.mxu0 0.0
    %506 = vmatprep.subr.mxu0 0.0
    %507 = vmatpush1.msra.mxu0 0.0
    %508 = vmatprep.subr.mxu0 0.0
    %509 = vmatpush1.msra.mxu0 0.0
    %510 = vmatprep.subr.mxu0 0.0
    %511 = vmatpush1.msra.mxu0 0.0
    %512 = vmatprep.subr.mxu0 0.0
    %513 = vmatpush1.msra.mxu0 0.0
    %514 = vmatprep.subr.mxu0 0.0
    %515 = vmatpush1.msra.mxu0 0.0
    %516 = vmatprep.subr.mxu0 0.0
    %517 = vmatpush1.msra.mxu0 0.0
    %518 = vmatprep.subr.mxu0 0.0
    %519 = vmatpush1.msra.mxu0 0.0
    %520 = vmatprep.subr.mxu0 0.0
    %521 = vmatpush1.msra.mxu0 0.0
    %522 = vmatprep.subr.mxu0 0.0
    %523 = vmatpush1.msra.mxu0 0.0
    %524 = vmatprep.subr.mxu0 0.0
    %525 = vmatpush1.msra.mxu0 0.0
    %526 = vmatprep.subr.mxu0 0.0
    %527 = vmatpush1.msra.mxu0 0.0
    %528 = vmatprep.subr.mxu0 0.0
    %529 = vmatpush1.msra.mxu0 0.0
    %530 = vmatprep.subr.mxu0 0.0
    %531 = vmatpush1.msra.mxu0 0.0
    %532 = vmatprep.subr.mxu0 0.0
    %533 = vmatpush1.msra.mxu0 0.0
    %534 = vmatprep.subr.mxu0 0.0
    %535 = vmatpush1.msra.mxu0 0.0
    %536 = vmatprep.subr.mxu0 0.0
    %537 = vmatpush1.msra.mxu0 0.0
    %538 = vmatprep.mubr.f32.mxu0 0.0
    %539 = vmatmul.mubr.f32.gmra.mrb[0].mxu0 %v472
    %v540 = vpop.f32.mrb[0].mxu0
    %v541 = vadd.f32 0.0, %v540
    %v542 = vpop.f32.mrb[0].mxu0
    %543 = vdwg.mxu0
    %v545 = vrot.slane %v541, 2
    %v547 = vadd.f32 %v148, %v545
    %v548 = vxor.u32 %v547, 2147483648
    %v549 = vmul.f32 %v548, 1.442695
    %v550 = vpow.pop %v549
    %v551 = vadd.f32 %v550, 1.0
    %v552 = vrcp.pop %v551
    %v553 = vmul.f32 1.0, %v552
    %v554 = vtanh.pop %v547
    %v556 = vrot.slane %v461, 6
    %v558 = vmul.f32 %v553, %v556
    %560 = vrot.lane.b32.xlu0 %v554, 32
    %v561 = vpop.permute.xlu0 %560
    %v563 = vmul.f32 %v553, %v561
    %565 = vrot.lane.b32.xlu0 %v563, 32
    %v566 = vpop.permute.xlu0 %565
    %v568 = vadd.f32 %v558, %v566
    %v569 = vtanh.pop %v568
    %571 = vrot.lane.b32.xlu0 %v569, 32
    %v572 = vpop.permute.xlu0 %571
    %v574 = vmul.f32 %v553, %v572
    %v576 = vrot.slane %v574, 6
    %577 = vrot.lane.b32.xlu0 %v576, 64
    %v578 = vpop.permute.xlu0 %577
    %v579 = vsel %vm156, %v578, 0
    %581 = vmatprep.subr.mxu0 0.0
    %582 = vmatpush1.msra.mxu0 %v63
    %583 = vmatprep.subr.mxu0 0.0
    %584 = vmatpush1.msra.mxu0 %v64
    %585 = vmatprep.subr.mxu0 0.0
    %586 = vmatpush1.msra.mxu0 %v65
    %587 = vmatprep.subr.mxu0 0.0
    %588 = vmatpush1.msra.mxu0 %v66
    %589 = vmatprep.subr.mxu0 0.0
    %590 = vmatpush1.msra.mxu0 0.0
    %591 = vmatprep.subr.mxu0 0.0
    %592 = vmatpush1.msra.mxu0 0.0
    %593 = vmatprep.subr.mxu0 0.0
    %594 = vmatpush1.msra.mxu0 0.0
    %595 = vmatprep.subr.mxu0 0.0
    %596 = vmatpush1.msra.mxu0 0.0
    %597 = vmatprep.subr.mxu0 0.0
    %598 = vmatpush1.msra.mxu0 0.0
    %599 = vmatprep.subr.mxu0 0.0
    %600 = vmatpush1.msra.mxu0 0.0
    %601 = vmatprep.subr.mxu0 0.0
    %602 = vmatpush1.msra.mxu0 0.0
    %603 = vmatprep.subr.mxu0 0.0
    %604 = vmatpush1.msra.mxu0 0.0
    %605 = vmatprep.subr.mxu0 0.0
    %606 = vmatpush1.msra.mxu0 0.0
    %607 = vmatprep.subr.mxu0 0.0
    %608 = vmatpush1.msra.mxu0 0.0
    %609 = vmatprep.subr.mxu0 0.0
    %610 = vmatpush1.msra.mxu0 0.0
    %611 = vmatprep.subr.mxu0 0.0
    %612 = vmatpush1.msra.mxu0 0.0
    %613 = vmatprep.subr.mxu0 0.0
    %614 = vmatpush1.msra.mxu0 0.0
    %615 = vmatprep.subr.mxu0 0.0
    %616 = vmatpush1.msra.mxu0 0.0
    %617 = vmatprep.subr.mxu0 0.0
    %618 = vmatpush1.msra.mxu0 0.0
    %619 = vmatprep.subr.mxu0 0.0
    %620 = vmatpush1.msra.mxu0 0.0
    %621 = vmatprep.subr.mxu0 0.0
    %622 = vmatpush1.msra.mxu0 0.0
    %623 = vmatprep.subr.mxu0 0.0
    %624 = vmatpush1.msra.mxu0 0.0
    %625 = vmatprep.subr.mxu0 0.0
    %626 = vmatpush1.msra.mxu0 0.0
    %627 = vmatprep.subr.mxu0 0.0
    %628 = vmatpush1.msra.mxu0 0.0
    %629 = vmatprep.subr.mxu0 0.0
    %630 = vmatpush1.msra.mxu0 0.0
    %631 = vmatprep.subr.mxu0 0.0
    %632 = vmatpush1.msra.mxu0 0.0
    %633 = vmatprep.subr.mxu0 0.0
    %634 = vmatpush1.msra.mxu0 0.0
    %635 = vmatprep.subr.mxu0 0.0
    %636 = vmatpush1.msra.mxu0 0.0
    %637 = vmatprep.subr.mxu0 0.0
    %638 = vmatpush1.msra.mxu0 0.0
    %639 = vmatprep.subr.mxu0 0.0
    %640 = vmatpush1.msra.mxu0 0.0
    %641 = vmatprep.subr.mxu0 0.0
    %642 = vmatpush1.msra.mxu0 0.0
    %643 = vmatprep.subr.mxu0 0.0
    %644 = vmatpush1.msra.mxu0 0.0
    %645 = vmatprep.mubr.f32.mxu0 0.0
    %646 = vmatmul.mubr.f32.gmra.mrb[0].mxu0 %v579
    %v647 = vpop.f32.mrb[0].mxu0
    %v648 = vadd.f32 0.0, %v647
    %v649 = vpop.f32.mrb[0].mxu0
    %650 = vdwg.mxu0
    %v651 = vadd.f32 %v153, %v648
    %v652 = vxor.u32 %v651, 2147483648
    %v653 = vmul.f32 %v652, 1.442695
    %v654 = vpow.pop %v653
    %v655 = vadd.f32 %v654, 1.0
    %v656 = vrcp.pop %v655
    %v657 = vmul.f32 1.0, %v656
    %v658 = vtanh.pop %v651
    %v660 = vrot.slane %v568, 6
    %v662 = vmul.f32 %v657, %v660
    %664 = vrot.lane.b32.xlu0 %v658, 32
    %v665 = vpop.permute.xlu0 %664
    %v667 = vmul.f32 %v657, %v665
    %669 = vrot.lane.b32.xlu0 %v667, 32
    %v670 = vpop.permute.xlu0 %669
    %v672 = vadd.f32 %v662, %v670
    %v673 = vtanh.pop %v672
    %675 = vrot.lane.b32.xlu0 %v673, 32
    %v676 = vpop.permute.xlu0 %675
    %v678 = vmul.f32 %v657, %v676
    %680 = vrot.lane.b32.xlu0 %v678, 64
    %v681 = vpop.permute.xlu0 %680
    %v682 = vsel %vm156, %v681, 0
    %684 = vmatprep.subr.mxu0 0.0
    %685 = vmatpush1.msra.mxu0 %v63
    %686 = vmatprep.subr.mxu0 0.0
    %687 = vmatpush1.msra.mxu0 %v64
    %688 = vmatprep.subr.mxu0 0.0
    %689 = vmatpush1.msra.mxu0 %v65
    %690 = vmatprep.subr.mxu0 0.0
    %691 = vmatpush1.msra.mxu0 %v66
    %692 = vmatprep.subr.mxu0 0.0
    %693 = vmatpush1.msra.mxu0 0.0
    %694 = vmatprep.subr.mxu0 0.0
    %695 = vmatpush1.msra.mxu0 0.0
    %696 = vmatprep.subr.mxu0 0.0
    %697 = vmatpush1.msra.mxu0 0.0
    %698 = vmatprep.subr.mxu0 0.0
    %699 = vmatpush1.msra.mxu0 0.0
    %700 = vmatprep.subr.mxu0 0.0
    %701 = vmatpush1.msra.mxu0 0.0
    %702 = vmatprep.subr.mxu0 0.0
    %703 = vmatpush1.msra.mxu0 0.0
    %704 = vmatprep.subr.mxu0 0.0
    %705 = vmatpush1.msra.mxu0 0.0
    %706 = vmatprep.subr.mxu0 0.0
    %707 = vmatpush1.msra.mxu0 0.0
    %708 = vmatprep.subr.mxu0 0.0
    %709 = vmatpush1.msra.mxu0 0.0
    %710 = vmatprep.subr.mxu0 0.0
    %711 = vmatpush1.msra.mxu0 0.0
    %712 = vmatprep.subr.mxu0 0.0
    %713 = vmatpush1.msra.mxu0 0.0
    %714 = vmatprep.subr.mxu0 0.0
    %715 = vmatpush1.msra.mxu0 0.0
    %716 = vmatprep.subr.mxu0 0.0
    %717 = vmatpush1.msra.mxu0 0.0
    %718 = vmatprep.subr.mxu0 0.0
    %719 = vmatpush1.msra.mxu0 0.0
    %720 = vmatprep.subr.mxu0 0.0
    %721 = vmatpush1.msra.mxu0 0.0
    %722 = vmatprep.subr.mxu0 0.0
    %723 = vmatpush1.msra.mxu0 0.0
    %724 = vmatprep.subr.mxu0 0.0
    %725 = vmatpush1.msra.mxu0 0.0
    %726 = vmatprep.subr.mxu0 0.0
    %727 = vmatpush1.msra.mxu0 0.0
    %728 = vmatprep.subr.mxu0 0.0
    %729 = vmatpush1.msra.mxu0 0.0
    %730 = vmatprep.subr.mxu0 0.0
    %731 = vmatpush1.msra.mxu0 0.0
    %732 = vmatprep.subr.mxu0 0.0
    %733 = vmatpush1.msra.mxu0 0.0
    %734 = vmatprep.subr.mxu0 0.0
    %735 = vmatpush1.msra.mxu0 0.0
    %736 = vmatprep.subr.mxu0 0.0
    %737 = vmatpush1.msra.mxu0 0.0
    %738 = vmatprep.subr.mxu0 0.0
    %739 = vmatpush1.msra.mxu0 0.0
    %740 = vmatprep.subr.mxu0 0.0
    %741 = vmatpush1.msra.mxu0 0.0
    %742 = vmatprep.subr.mxu0 0.0
    %743 = vmatpush1.msra.mxu0 0.0
    %744 = vmatprep.subr.mxu0 0.0
    %745 = vmatpush1.msra.mxu0 0.0
    %746 = vmatprep.subr.mxu0 0.0
    %747 = vmatpush1.msra.mxu0 0.0
    %748 = vmatprep.mubr.f32.mxu0 0.0
    %749 = vmatmul.mubr.f32.gmra.mrb[0].mxu0 %v682
    %v750 = vpop.f32.mrb[0].mxu0
    %v751 = vadd.f32 0.0, %v750
    %v752 = vpop.f32.mrb[0].mxu0
    %753 = vdwg.mxu0
    %v755 = vrot.slane %v751, 6
    %v757 = vadd.f32 %v153, %v755
    %v758 = vxor.u32 %v757, 2147483648
    %v759 = vmul.f32 %v758, 1.442695
    %v760 = vpow.pop %v759
    %v761 = vadd.f32 %v760, 1.0
    %v762 = vrcp.pop %v761
    %v763 = vmul.f32 1.0, %v762
    %v764 = vtanh.pop %v757
    %v766 = vrot.slane %v672, 6
    %v768 = vmul.f32 %v763, %v766
    %770 = vrot.lane.b32.xlu0 %v764, 32
    %v771 = vpop.permute.xlu0 %770
    %v773 = vmul.f32 %v763, %v771
    %775 = vrot.lane.b32.xlu0 %v773, 32
    %v776 = vpop.permute.xlu0 %775
    %v778 = vadd.f32 %v768, %v776
    %v779 = vtanh.pop %v778
    %781 = vrot.lane.b32.xlu0 %v779, 32
    %v782 = vpop.permute.xlu0 %781
    %v784 = vmul.f32 %v763, %v782
    %v786 = vrot.slane %v784, 2
    %787 = vrot.lane.b32.xlu0 %v786, 64
    %v788 = vpop.permute.xlu0 %787
    %v789 = vsel %vm156, %v788, 0
    %791 = vmatprep.subr.mxu0 0.0
    %792 = vmatpush1.msra.mxu0 %v63
    %793 = vmatprep.subr.mxu0 0.0
    %794 = vmatpush1.msra.mxu0 %v64
    %795 = vmatprep.subr.mxu0 0.0
    %796 = vmatpush1.msra.mxu0 %v65
    %797 = vmatprep.subr.mxu0 0.0
    %798 = vmatpush1.msra.mxu0 %v66
    %799 = vmatprep.subr.mxu0 0.0
    %800 = vmatpush1.msra.mxu0 0.0
    %801 = vmatprep.subr.mxu0 0.0
    %802 = vmatpush1.msra.mxu0 0.0
    %803 = vmatprep.subr.mxu0 0.0
    %804 = vmatpush1.msra.mxu0 0.0
    %805 = vmatprep.subr.mxu0 0.0
    %806 = vmatpush1.msra.mxu0 0.0
    %807 = vmatprep.subr.mxu0 0.0
    %808 = vmatpush1.msra.mxu0 0.0
    %809 = vmatprep.subr.mxu0 0.0
    %810 = vmatpush1.msra.mxu0 0.0
    %811 = vmatprep.subr.mxu0 0.0
    %812 = vmatpush1.msra.mxu0 0.0
    %813 = vmatprep.subr.mxu0 0.0
    %814 = vmatpush1.msra.mxu0 0.0
    %815 = vmatprep.subr.mxu0 0.0
    %816 = vmatpush1.msra.mxu0 0.0
    %817 = vmatprep.subr.mxu0 0.0
    %818 = vmatpush1.msra.mxu0 0.0
    %819 = vmatprep.subr.mxu0 0.0
    %820 = vmatpush1.msra.mxu0 0.0
    %821 = vmatprep.subr.mxu0 0.0
    %822 = vmatpush1.msra.mxu0 0.0
    %823 = vmatprep.subr.mxu0 0.0
    %824 = vmatpush1.msra.mxu0 0.0
    %825 = vmatprep.subr.mxu0 0.0
    %826 = vmatpush1.msra.mxu0 0.0
    %827 = vmatprep.subr.mxu0 0.0
    %828 = vmatpush1.msra.mxu0 0.0
    %829 = vmatprep.subr.mxu0 0.0
    %830 = vmatpush1.msra.mxu0 0.0
    %831 = vmatprep.subr.mxu0 0.0
    %832 = vmatpush1.msra.mxu0 0.0
    %833 = vmatprep.subr.mxu0 0.0
    %834 = vmatpush1.msra.mxu0 0.0
    %835 = vmatprep.subr.mxu0 0.0
    %836 = vmatpush1.msra.mxu0 0.0
    %837 = vmatprep.subr.mxu0 0.0
    %838 = vmatpush1.msra.mxu0 0.0
    %839 = vmatprep.subr.mxu0 0.0
    %840 = vmatpush1.msra.mxu0 0.0
    %841 = vmatprep.subr.mxu0 0.0
    %842 = vmatpush1.msra.mxu0 0.0
    %843 = vmatprep.subr.mxu0 0.0
    %844 = vmatpush1.msra.mxu0 0.0
    %845 = vmatprep.subr.mxu0 0.0
    %846 = vmatpush1.msra.mxu0 0.0
    %847 = vmatprep.subr.mxu0 0.0
    %848 = vmatpush1.msra.mxu0 0.0
    %849 = vmatprep.subr.mxu0 0.0
    %850 = vmatpush1.msra.mxu0 0.0
    %851 = vmatprep.subr.mxu0 0.0
    %852 = vmatpush1.msra.mxu0 0.0
    %853 = vmatprep.subr.mxu0 0.0
    %854 = vmatpush1.msra.mxu0 0.0
    %855 = vmatprep.mubr.f32.mxu0 0.0
    %856 = vmatmul.mubr.f32.gmra.mrb[0].mxu0 %v789
    %v857 = vpop.f32.mrb[0].mxu0
    %v858 = vadd.f32 0.0, %v857
    %v859 = vpop.f32.mrb[0].mxu0
    %860 = vdwg.mxu0
    %v862 = vrot.slane %v858, 4
    %v864 = vadd.f32 %v153, %v862
    %v865 = vxor.u32 %v864, 2147483648
    %v866 = vmul.f32 %v865, 1.442695
    %v867 = vpow.pop %v866
    %v868 = vadd.f32 %v867, 1.0
    %v869 = vrcp.pop %v868
    %v870 = vmul.f32 1.0, %v869
    %v871 = vtanh.pop %v864
    %v873 = vrot.slane %v778, 6
    %v875 = vmul.f32 %v870, %v873
    %877 = vrot.lane.b32.xlu0 %v871, 32
    %v878 = vpop.permute.xlu0 %877
    %v880 = vmul.f32 %v870, %v878
    %882 = vrot.lane.b32.xlu0 %v880, 32
    %v883 = vpop.permute.xlu0 %882
    %v885 = vadd.f32 %v875, %v883
    %v886 = vtanh.pop %v885
    %888 = vrot.lane.b32.xlu0 %v886, 32
    %v889 = vpop.permute.xlu0 %888
    %v891 = vmul.f32 %v870, %v889
    %v893 = vrot.slane %v891, 4
    %894 = vrot.lane.b32.xlu0 %v893, 64
    %v895 = vpop.permute.xlu0 %894
    %v896 = vsel %vm156, %v895, 0
    %898 = vmatprep.subr.mxu0 0.0
    %899 = vmatpush1.msra.mxu0 %v63
    %900 = vmatprep.subr.mxu0 0.0
    %901 = vmatpush1.msra.mxu0 %v64
    %902 = vmatprep.subr.mxu0 0.0
    %903 = vmatpush1.msra.mxu0 %v65
    %904 = vmatprep.subr.mxu0 0.0
    %905 = vmatpush1.msra.mxu0 %v66
    %906 = vmatprep.subr.mxu0 0.0
    %907 = vmatpush1.msra.mxu0 0.0
    %908 = vmatprep.subr.mxu0 0.0
    %909 = vmatpush1.msra.mxu0 0.0
    %910 = vmatprep.subr.mxu0 0.0
    %911 = vmatpush1.msra.mxu0 0.0
    %912 = vmatprep.subr.mxu0 0.0
    %913 = vmatpush1.msra.mxu0 0.0
    %914 = vmatprep.subr.mxu0 0.0
    %915 = vmatpush1.msra.mxu0 0.0
    %916 = vmatprep.subr.mxu0 0.0
    %917 = vmatpush1.msra.mxu0 0.0
    %918 = vmatprep.subr.mxu0 0.0
    %919 = vmatpush1.msra.mxu0 0.0
    %920 = vmatprep.subr.mxu0 0.0
    %921 = vmatpush1.msra.mxu0 0.0
    %922 = vmatprep.subr.mxu0 0.0
    %923 = vmatpush1.msra.mxu0 0.0
    %924 = vmatprep.subr.mxu0 0.0
    %925 = vmatpush1.msra.mxu0 0.0
    %926 = vmatprep.subr.mxu0 0.0
    %927 = vmatpush1.msra.mxu0 0.0
    %928 = vmatprep.subr.mxu0 0.0
    %929 = vmatpush1.msra.mxu0 0.0
    %930 = vmatprep.subr.mxu0 0.0
    %931 = vmatpush1.msra.mxu0 0.0
    %932 = vmatprep.subr.mxu0 0.0
    %933 = vmatpush1.msra.mxu0 0.0
    %934 = vmatprep.subr.mxu0 0.0
    %935 = vmatpush1.msra.mxu0 0.0
    %936 = vmatprep.subr.mxu0 0.0
    %937 = vmatpush1.msra.mxu0 0.0
    %938 = vmatprep.subr.mxu0 0.0
    %939 = vmatpush1.msra.mxu0 0.0
    %940 = vmatprep.subr.mxu0 0.0
    %941 = vmatpush1.msra.mxu0 0.0
    %942 = vmatprep.subr.mxu0 0.0
    %943 = vmatpush1.msra.mxu0 0.0
    %944 = vmatprep.subr.mxu0 0.0
    %945 = vmatpush1.msra.mxu0 0.0
    %946 = vmatprep.subr.mxu0 0.0
    %947 = vmatpush1.msra.mxu0 0.0
    %948 = vmatprep.subr.mxu0 0.0
    %949 = vmatpush1.msra.mxu0 0.0
    %950 = vmatprep.subr.mxu0 0.0
    %951 = vmatpush1.msra.mxu0 0.0
    %952 = vmatprep.subr.mxu0 0.0
    %953 = vmatpush1.msra.mxu0 0.0
    %954 = vmatprep.subr.mxu0 0.0
    %955 = vmatpush1.msra.mxu0 0.0
    %956 = vmatprep.subr.mxu0 0.0
    %957 = vmatpush1.msra.mxu0 0.0
    %958 = vmatprep.subr.mxu0 0.0
    %959 = vmatpush1.msra.mxu0 0.0
    %960 = vmatprep.subr.mxu0 0.0
    %961 = vmatpush1.msra.mxu0 0.0
    %962 = vmatprep.mubr.f32.mxu0 0.0
    %963 = vmatmul.mubr.f32.gmra.mrb[0].mxu0 %v896
    %v964 = vpop.f32.mrb[0].mxu0
    %v965 = vadd.f32 0.0, %v964
    %v966 = vpop.f32.mrb[0].mxu0
    %967 = vdwg.mxu0
    %v969 = vrot.slane %v965, 2
    %v971 = vadd.f32 %v153, %v969
    %v972 = vxor.u32 %v971, 2147483648
    %v973 = vmul.f32 %v972, 1.442695
    %v974 = vpow.pop %v973
    %v975 = vadd.f32 %v974, 1.0
    %v976 = vrcp.pop %v975
    %v977 = vmul.f32 1.0, %v976
    %v978 = vtanh.pop %v971
    %v980 = vrot.slane %v885, 6
    %v982 = vmul.f32 %v977, %v980
    %984 = vrot.lane.b32.xlu0 %v978, 32
    %v985 = vpop.permute.xlu0 %984
    %v987 = vmul.f32 %v977, %v985
    %989 = vrot.lane.b32.xlu0 %v987, 32
    %v990 = vpop.permute.xlu0 %989
    %v992 = vadd.f32 %v982, %v990
    %v993 = vtanh.pop %v992
    %995 = vrot.lane.b32.xlu0 %v993, 32
    %v996 = vpop.permute.xlu0 %995
    %v998 = vmul.f32 %v977, %v996
    %vm999 = vcmask 1041408
    %v1000 = vsel %vm999, %v254, %v360
    %vm1001 = vcmask 1043456
    %v1002 = vsel %vm1001, %v1000, %v467
    %vm1003 = vcmask 1045504
    %v1004 = vsel %vm1003, %v1002, %v574
    %v1005 = vsel %vm999, %v678, %v784
    %v1006 = vsel %vm1001, %v1005, %v891
    %v1007 = vsel %vm1003, %v1006, %v998
    %v1008 = vld [vmem:[%s4] sm:$0xff]
    %v1009 = vld [vmem:[%s4 + $0x8] sm:$0xff]
    %v1010 = vld [vmem:[%s4 + $0x10] sm:$0xff]
    %v1011 = vld [vmem:[%s4 + $0x18] sm:$0xff]
    %v1012 = vld [vmem:[%s5] sm:$0xff]
    %v1013 = vld [vmem:[%s5 + $0x8] sm:$0xff]
    %v1014 = vld [vmem:[%s5 + $0x10] sm:$0xff]
    %v1015 = vld [vmem:[%s5 + $0x18] sm:$0xff]
    %v1016 = vld [vmem:[%s6] sm:$0x1]
    %v1018 = vlaneseq
    %v1019 = vshrl.u32 %v1018, 7
    %v1020 = vsub.s32 0, %v1019
    %v1021 = vrot.slane %v1016, %v1020
    %1025 = vrot.lane.b32.xlu0 %v1004, 64
    %v1026 = vpop.permute.xlu0 %1025
    %1027 = vrot.lane.b32.xlu0 %v1007, 64
    %v1028 = vpop.permute.xlu0 %1027
    %v1029 = vsel %vm156, %v1026, 0
    %v1031 = vsel %vm156, %v1028, 0
    %1033 = vmatprep.subr.mxu0 0.0
    %1034 = vmatpush1.msra.mxu0 %v1008
    %1035 = vmatprep.subr.mxu0 0.0
    %1036 = vmatpush1.msra.mxu0 %v1009
    %1037 = vmatprep.subr.mxu0 0.0
    %1038 = vmatpush1.msra.mxu0 %v1010
    %1039 = vmatprep.subr.mxu0 0.0
    %1040 = vmatpush1.msra.mxu0 %v1011
    %1041 = vmatprep.subr.mxu0 0.0
    %1042 = vmatpush1.msra.mxu0 0.0
    %1043 = vmatprep.subr.mxu0 0.0
    %1044 = vmatpush1.msra.mxu0 0.0
    %1045 = vmatprep.subr.mxu0 0.0
    %1046 = vmatpush1.msra.mxu0 0.0
    %1047 = vmatprep.subr.mxu0 0.0
    %1048 = vmatpush1.msra.mxu0 0.0
    %1049 = vmatprep.subr.mxu0 0.0
    %1050 = vmatpush1.msra.mxu0 0.0
    %1051 = vmatprep.subr.mxu0 0.0
    %1052 = vmatpush1.msra.mxu0 0.0
    %1053 = vmatprep.subr.mxu0 0.0
    %1054 = vmatpush1.msra.mxu0 0.0
    %1055 = vmatprep.subr.mxu0 0.0
    %1056 = vmatpush1.msra.mxu0 0.0
    %1057 = vmatprep.subr.mxu0 0.0
    %1058 = vmatpush1.msra.mxu0 0.0
    %1059 = vmatprep.subr.mxu0 0.0
    %1060 = vmatpush1.msra.mxu0 0.0
    %1061 = vmatprep.subr.mxu0 0.0
    %1062 = vmatpush1.msra.mxu0 0.0
    %1063 = vmatprep.subr.mxu0 0.0
    %1064 = vmatpush1.msra.mxu0 0.0
    %1065 = vmatprep.subr.mxu0 0.0
    %1066 = vmatpush1.msra.mxu0 0.0
    %1067 = vmatprep.subr.mxu0 0.0
    %1068 = vmatpush1.msra.mxu0 0.0
    %1069 = vmatprep.subr.mxu0 0.0
    %1070 = vmatpush1.msra.mxu0 0.0
    %1071 = vmatprep.subr.mxu0 0.0
    %1072 = vmatpush1.msra.mxu0 0.0
    %1073 = vmatprep.subr.mxu0 0.0
    %1074 = vmatpush1.msra.mxu0 0.0
    %1075 = vmatprep.subr.mxu0 0.0
    %1076 = vmatpush1.msra.mxu0 0.0
    %1077 = vmatprep.subr.mxu0 0.0
    %1078 = vmatpush1.msra.mxu0 0.0
    %1079 = vmatprep.subr.mxu0 0.0
    %1080 = vmatpush1.msra.mxu0 0.0
    %1081 = vmatprep.subr.mxu0 0.0
    %1082 = vmatpush1.msra.mxu0 0.0
    %1083 = vmatprep.subr.mxu0 0.0
    %1084 = vmatpush1.msra.mxu0 0.0
    %1085 = vmatprep.subr.mxu0 0.0
    %1086 = vmatpush1.msra.mxu0 0.0
    %1087 = vmatprep.subr.mxu0 0.0
    %1088 = vmatpush1.msra.mxu0 0.0
    %1089 = vmatprep.subr.mxu0 0.0
    %1090 = vmatpush1.msra.mxu0 0.0
    %1091 = vmatprep.subr.mxu0 0.0
    %1092 = vmatpush1.msra.mxu0 0.0
    %1093 = vmatprep.subr.mxu0 0.0
    %1094 = vmatpush1.msra.mxu0 0.0
    %1095 = vmatprep.subr.mxu0 0.0
    %1096 = vmatpush1.msra.mxu0 0.0
    %1097 = vmatprep.mubr.f32.mxu0 0.0
    %1098 = vmatmul.mubr.f32.gmra.mrb[0].mxu0 %v1029
    %v1099 = vpop.f32.mrb[0].mxu0
    %v1100 = vadd.f32 %v1021, %v1099
    %v1101 = vpop.f32.mrb[0].mxu0
    %1102 = vmatprep.mubr.f32.mxu0 0.0
    %1103 = vmatmul.mubr.f32.gmra.mrb[0].mxu0 %v1031
    %v1104 = vpop.f32.mrb[0].mxu0
    %v1105 = vadd.f32 %v1021, %v1104
    %v1106 = vpop.f32.mrb[0].mxu0
    %1107 = vdwg.mxu0
    %1108 = vmatprep.subr.mxu0 0.0
    %1109 = vmatpush1.msra.mxu0 %v1012
    %1110 = vmatprep.subr.mxu0 0.0
    %1111 = vmatpush1.msra.mxu0 %v1013
    %1112 = vmatprep.subr.mxu0 0.0
    %1113 = vmatpush1.msra.mxu0 %v1014
    %1114 = vmatprep.subr.mxu0 0.0
    %1115 = vmatpush1.msra.mxu0 %v1015
    %1116 = vmatprep.subr.mxu0 0.0
    %1117 = vmatpush1.msra.mxu0 0.0
    %1118 = vmatprep.subr.mxu0 0.0
    %1119 = vmatpush1.msra.mxu0 0.0
    %1120 = vmatprep.subr.mxu0 0.0
    %1121 = vmatpush1.msra.mxu0 0.0
    %1122 = vmatprep.subr.mxu0 0.0
    %1123 = vmatpush1.msra.mxu0 0.0
    %1124 = vmatprep.subr.mxu0 0.0
    %1125 = vmatpush1.msra.mxu0 0.0
    %1126 = vmatprep.subr.mxu0 0.0
    %1127 = vmatpush1.msra.mxu0 0.0
    %1128 = vmatprep.subr.mxu0 0.0
    %1129 = vmatpush1.msra.mxu0 0.0
    %1130 = vmatprep.subr.mxu0 0.0
    %1131 = vmatpush1.msra.mxu0 0.0
    %1132 = vmatprep.subr.mxu0 0.0
    %1133 = vmatpush1.msra.mxu0 0.0
    %1134 = vmatprep.subr.mxu0 0.0
    %1135 = vmatpush1.msra.mxu0 0.0
    %1136 = vmatprep.subr.mxu0 0.0
    %1137 = vmatpush1.msra.mxu0 0.0
    %1138 = vmatprep.subr.mxu0 0.0
    %1139 = vmatpush1.msra.mxu0 0.0
    %1140 = vmatprep.subr.mxu0 0.0
    %1141 = vmatpush1.msra.mxu0 0.0
    %1142 = vmatprep.subr.mxu0 0.0
    %1143 = vmatpush1.msra.mxu0 0.0
    %1144 = vmatprep.subr.mxu0 0.0
    %1145 = vmatpush1.msra.mxu0 0.0
    %1146 = vmatprep.subr.mxu0 0.0
    %1147 = vmatpush1.msra.mxu0 0.0
    %1148 = vmatprep.subr.mxu0 0.0
    %1149 = vmatpush1.msra.mxu0 0.0
    %1150 = vmatprep.subr.mxu0 0.0
    %1151 = vmatpush1.msra.mxu0 0.0
    %1152 = vmatprep.subr.mxu0 0.0
    %1153 = vmatpush1.msra.mxu0 0.0
    %1154 = vmatprep.subr.mxu0 0.0
    %1155 = vmatpush1.msra.mxu0 0.0
    %1156 = vmatprep.subr.mxu0 0.0
    %1157 = vmatpush1.msra.mxu0 0.0
    %1158 = vmatprep.subr.mxu0 0.0
    %1159 = vmatpush1.msra.mxu0 0.0
    %1160 = vmatprep.subr.mxu0 0.0
    %1161 = vmatpush1.msra.mxu0 0.0
    %1162 = vmatprep.subr.mxu0 0.0
    %1163 = vmatpush1.msra.mxu0 0.0
    %1164 = vmatprep.subr.mxu0 0.0
    %1165 = vmatpush1.msra.mxu0 0.0
    %1166 = vmatprep.subr.mxu0 0.0
    %1167 = vmatpush1.msra.mxu0 0.0
    %1168 = vmatprep.subr.mxu0 0.0
    %1169 = vmatpush1.msra.mxu0 0.0
    %1170 = vmatprep.subr.mxu0 0.0
    %1171 = vmatpush1.msra.mxu0 0.0
    %1172 = vmatprep.mubr.f32.mxu0 0.0
    %1173 = vmatmul.mubr.f32.gmra.mrb[0].mxu0 %v158
    %v1174 = vpop.f32.mrb[0].mxu0
    %v1175 = vadd.f32 0.0, %v1174
    %v1176 = vpop.f32.mrb[0].mxu0
    %1177 = vdwg.mxu0
    %v1178 = vadd.f32 %v1100, %v1175
    %v1179 = vxor.u32 %v1178, 2147483648
    %v1180 = vmul.f32 %v1179, 1.442695
    %v1181 = vpow.pop %v1180
    %v1182 = vadd.f32 %v1181, 1.0
    %v1183 = vrcp.pop %v1182
    %v1184 = vmul.f32 1.0, %v1183
    %v1185 = vtanh.pop %v1178
    %v1186 = vmul.f32 %v1184, 0.0
    %1188 = vrot.lane.b32.xlu0 %v1185, 32
    %v1189 = vpop.permute.xlu0 %1188
    %v1191 = vmul.f32 %v1184, %v1189
    %1193 = vrot.lane.b32.xlu0 %v1191, 32
    %v1194 = vpop.permute.xlu0 %1193
    %v1196 = vadd.f32 %v1186, %v1194
    %v1197 = vtanh.pop %v1196
    %1199 = vrot.lane.b32.xlu0 %v1197, 32
    %v1200 = vpop.permute.xlu0 %1199
    %v1202 = vmul.f32 %v1184, %v1200
    %1204 = vrot.lane.b32.xlu0 %v1202, 64
    %v1205 = vpop.permute.xlu0 %1204
    %v1206 = vsel %vm156, %v1205, 0
    %1208 = vmatprep.subr.mxu0 0.0
    %1209 = vmatpush1.msra.mxu0 %v1012
    %1210 = vmatprep.subr.mxu0 0.0
    %1211 = vmatpush1.msra.mxu0 %v1013
    %1212 = vmatprep.subr.mxu0 0.0
    %1213 = vmatpush1.msra.mxu0 %v1014
    %1214 = vmatprep.subr.mxu0 0.0
    %1215 = vmatpush1.msra.mxu0 %v1015
    %1216 = vmatprep.subr.mxu0 0.0
    %1217 = vmatpush1.msra.mxu0 0.0
    %1218 = vmatprep.subr.mxu0 0.0
    %1219 = vmatpush1.msra.mxu0 0.0
    %1220 = vmatprep.subr.mxu0 0.0
    %1221 = vmatpush1.msra.mxu0 0.0
    %1222 = vmatprep.subr.mxu0 0.0
    %1223 = vmatpush1.msra.mxu0 0.0
    %1224 = vmatprep.subr.mxu0 0.0
    %1225 = vmatpush1.msra.mxu0 0.0
    %1226 = vmatprep.subr.mxu0 0.0
    %1227 = vmatpush1.msra.mxu0 0.0
    %1228 = vmatprep.subr.mxu0 0.0
    %1229 = vmatpush1.msra.mxu0 0.0
    %1230 = vmatprep.subr.mxu0 0.0
    %1231 = vmatpush1.msra.mxu0 0.0
    %1232 = vmatprep.subr.mxu0 0.0
    %1233 = vmatpush1.msra.mxu0 0.0
    %1234 = vmatprep.subr.mxu0 0.0
    %1235 = vmatpush1.msra.mxu0 0.0
    %1236 = vmatprep.subr.mxu0 0.0
    %1237 = vmatpush1.msra.mxu0 0.0
    %1238 = vmatprep.subr.mxu0 0.0
    %1239 = vmatpush1.msra.mxu0 0.0
    %1240 = vmatprep.subr.mxu0 0.0
    %1241 = vmatpush1.msra.mxu0 0.0
    %1242 = vmatprep.subr.mxu0 0.0
    %1243 = vmatpush1.msra.mxu0 0.0
    %1244 = vmatprep.subr.mxu0 0.0
    %1245 = vmatpush1.msra.mxu0 0.0
    %1246 = vmatprep.subr.mxu0 0.0
    %1247 = vmatpush1.msra.mxu0 0.0
    %1248 = vmatprep.subr.mxu0 0.0
    %1249 = vmatpush1.msra.mxu0 0.0
    %1250 = vmatprep.subr.mxu0 0.0
    %1251 = vmatpush1.msra.mxu0 0.0
    %1252 = vmatprep.subr.mxu0 0.0
    %1253 = vmatpush1.msra.mxu0 0.0
    %1254 = vmatprep.subr.mxu0 0.0
    %1255 = vmatpush1.msra.mxu0 0.0
    %1256 = vmatprep.subr.mxu0 0.0
    %1257 = vmatpush1.msra.mxu0 0.0
    %1258 = vmatprep.subr.mxu0 0.0
    %1259 = vmatpush1.msra.mxu0 0.0
    %1260 = vmatprep.subr.mxu0 0.0
    %1261 = vmatpush1.msra.mxu0 0.0
    %1262 = vmatprep.subr.mxu0 0.0
    %1263 = vmatpush1.msra.mxu0 0.0
    %1264 = vmatprep.subr.mxu0 0.0
    %1265 = vmatpush1.msra.mxu0 0.0
    %1266 = vmatprep.subr.mxu0 0.0
    %1267 = vmatpush1.msra.mxu0 0.0
    %1268 = vmatprep.subr.mxu0 0.0
    %1269 = vmatpush1.msra.mxu0 0.0
    %1270 = vmatprep.subr.mxu0 0.0
    %1271 = vmatpush1.msra.mxu0 0.0
    %1272 = vmatprep.mubr.f32.mxu0 0.0
    %1273 = vmatmul.mubr.f32.gmra.mrb[0].mxu0 %v1206
    %v1274 = vpop.f32.mrb[0].mxu0
    %v1275 = vadd.f32 0.0, %v1274
    %v1276 = vpop.f32.mrb[0].mxu0
    %1277 = vdwg.mxu0
    %v1279 = vrot.slane %v1275, 6
    %v1281 = vadd.f32 %v1100, %v1279
    %v1282 = vxor.u32 %v1281, 2147483648
    %v1283 = vmul.f32 %v1282, 1.442695
    %v1284 = vpow.pop %v1283
    %v1285 = vadd.f32 %v1284, 1.0
    %v1286 = vrcp.pop %v1285
    %v1287 = vmul.f32 1.0, %v1286
    %v1288 = vtanh.pop %v1281
    %v1290 = vrot.slane %v1196, 6
    %v1292 = vmul.f32 %v1287, %v1290
    %1294 = vrot.lane.b32.xlu0 %v1288, 32
    %v1295 = vpop.permute.xlu0 %1294
    %v1297 = vmul.f32 %v1287, %v1295
    %1299 = vrot.lane.b32.xlu0 %v1297, 32
    %v1300 = vpop.permute.xlu0 %1299
    %v1302 = vadd.f32 %v1292, %v1300
    %v1303 = vtanh.pop %v1302
    %1305 = vrot.lane.b32.xlu0 %v1303, 32
    %v1306 = vpop.permute.xlu0 %1305
    %v1308 = vmul.f32 %v1287, %v1306
    %v1310 = vrot.slane %v1308, 2
    %1311 = vrot.lane.b32.xlu0 %v1310, 64
    %v1312 = vpop.permute.xlu0 %1311
    %v1313 = vsel %vm156, %v1312, 0
    %1315 = vmatprep.subr.mxu0 0.0
    %1316 = vmatpush1.msra.mxu0 %v1012
    %1317 = vmatprep.subr.mxu0 0.0
    %1318 = vmatpush1.msra.mxu0 %v1013
    %1319 = vmatprep.subr.mxu0 0.0
    %1320 = vmatpush1.msra.mxu0 %v1014
    %1321 = vmatprep.subr.mxu0 0.0
    %1322 = vmatpush1.msra.mxu0 %v1015
    %1323 = vmatprep.subr.mxu0 0.0
    %1324 = vmatpush1.msra.mxu0 0.0
    %1325 = vmatprep.subr.mxu0 0.0
    %1326 = vmatpush1.msra.mxu0 0.0
    %1327 = vmatprep.subr.mxu0 0.0
    %1328 = vmatpush1.msra.mxu0 0.0
    %1329 = vmatprep.subr.mxu0 0.0
    %1330 = vmatpush1.msra.mxu0 0.0
    %1331 = vmatprep.subr.mxu0 0.0
    %1332 = vmatpush1.msra.mxu0 0.0
    %1333 = vmatprep.subr.mxu0 0.0
    %1334 = vmatpush1.msra.mxu0 0.0
    %1335 = vmatprep.subr.mxu0 0.0
    %1336 = vmatpush1.msra.mxu0 0.0
    %1337 = vmatprep.subr.mxu0 0.0
    %1338 = vmatpush1.msra.mxu0 0.0
    %1339 = vmatprep.subr.mxu0 0.0
    %1340 = vmatpush1.msra.mxu0 0.0
    %1341 = vmatprep.subr.mxu0 0.0
    %1342 = vmatpush1.msra.mxu0 0.0
    %1343 = vmatprep.subr.mxu0 0.0
    %1344 = vmatpush1.msra.mxu0 0.0
    %1345 = vmatprep.subr.mxu0 0.0
    %1346 = vmatpush1.msra.mxu0 0.0
    %1347 = vmatprep.subr.mxu0 0.0
    %1348 = vmatpush1.msra.mxu0 0.0
    %1349 = vmatprep.subr.mxu0 0.0
    %1350 = vmatpush1.msra.mxu0 0.0
    %1351 = vmatprep.subr.mxu0 0.0
    %1352 = vmatpush1.msra.mxu0 0.0
    %1353 = vmatprep.subr.mxu0 0.0
    %1354 = vmatpush1.msra.mxu0 0.0
    %1355 = vmatprep.subr.mxu0 0.0
    %1356 = vmatpush1.msra.mxu0 0.0
    %1357 = vmatprep.subr.mxu0 0.0
    %1358 = vmatpush1.msra.mxu0 0.0
    %1359 = vmatprep.subr.mxu0 0.0
    %1360 = vmatpush1.msra.mxu0 0.0
    %1361 = vmatprep.subr.mxu0 0.0
    %1362 = vmatpush1.msra.mxu0 0.0
    %1363 = vmatprep.subr.mxu0 0.0
    %1364 = vmatpush1.msra.mxu0 0.0
    %1365 = vmatprep.subr.mxu0 0.0
    %1366 = vmatpush1.msra.mxu0 0.0
    %1367 = vmatprep.subr.mxu0 0.0
    %1368 = vmatpush1.msra.mxu0 0.0
    %1369 = vmatprep.subr.mxu0 0.0
    %1370 = vmatpush1.msra.mxu0 0.0
    %1371 = vmatprep.subr.mxu0 0.0
    %1372 = vmatpush1.msra.mxu0 0.0
    %1373 = vmatprep.subr.mxu0 0.0
    %1374 = vmatpush1.msra.mxu0 0.0
    %1375 = vmatprep.subr.mxu0 0.0
    %1376 = vmatpush1.msra.mxu0 0.0
    %1377 = vmatprep.subr.mxu0 0.0
    %1378 = vmatpush1.msra.mxu0 0.0
    %1379 = vmatprep.mubr.f32.mxu0 0.0
    %1380 = vmatmul.mubr.f32.gmra.mrb[0].mxu0 %v1313
    %v1381 = vpop.f32.mrb[0].mxu0
    %v1382 = vadd.f32 0.0, %v1381
    %v1383 = vpop.f32.mrb[0].mxu0
    %1384 = vdwg.mxu0
    %v1386 = vrot.slane %v1382, 4
    %v1388 = vadd.f32 %v1100, %v1386
    %v1389 = vxor.u32 %v1388, 2147483648
    %v1390 = vmul.f32 %v1389, 1.442695
    %v1391 = vpow.pop %v1390
    %v1392 = vadd.f32 %v1391, 1.0
    %v1393 = vrcp.pop %v1392
    %v1394 = vmul.f32 1.0, %v1393
    %v1395 = vtanh.pop %v1388
    %v1397 = vrot.slane %v1302, 6
    %v1399 = vmul.f32 %v1394, %v1397
    %1401 = vrot.lane.b32.xlu0 %v1395, 32
    %v1402 = vpop.permute.xlu0 %1401
    %v1404 = vmul.f32 %v1394, %v1402
    %1406 = vrot.lane.b32.xlu0 %v1404, 32
    %v1407 = vpop.permute.xlu0 %1406
    %v1409 = vadd.f32 %v1399, %v1407
    %v1410 = vtanh.pop %v1409
    %1412 = vrot.lane.b32.xlu0 %v1410, 32
    %v1413 = vpop.permute.xlu0 %1412
    %v1415 = vmul.f32 %v1394, %v1413
    %v1417 = vrot.slane %v1415, 4
    %1418 = vrot.lane.b32.xlu0 %v1417, 64
    %v1419 = vpop.permute.xlu0 %1418
    %v1420 = vsel %vm156, %v1419, 0
    %1422 = vmatprep.subr.mxu0 0.0
    %1423 = vmatpush1.msra.mxu0 %v1012
    %1424 = vmatprep.subr.mxu0 0.0
    %1425 = vmatpush1.msra.mxu0 %v1013
    %1426 = vmatprep.subr.mxu0 0.0
    %1427 = vmatpush1.msra.mxu0 %v1014
    %1428 = vmatprep.subr.mxu0 0.0
    %1429 = vmatpush1.msra.mxu0 %v1015
    %1430 = vmatprep.subr.mxu0 0.0
    %1431 = vmatpush1.msra.mxu0 0.0
    %1432 = vmatprep.subr.mxu0 0.0
    %1433 = vmatpush1.msra.mxu0 0.0
    %1434 = vmatprep.subr.mxu0 0.0
    %1435 = vmatpush1.msra.mxu0 0.0
    %1436 = vmatprep.subr.mxu0 0.0
    %1437 = vmatpush1.msra.mxu0 0.0
    %1438 = vmatprep.subr.mxu0 0.0
    %1439 = vmatpush1.msra.mxu0 0.0
    %1440 = vmatprep.subr.mxu0 0.0
    %1441 = vmatpush1.msra.mxu0 0.0
    %1442 = vmatprep.subr.mxu0 0.0
    %1443 = vmatpush1.msra.mxu0 0.0
    %1444 = vmatprep.subr.mxu0 0.0
    %1445 = vmatpush1.msra.mxu0 0.0
    %1446 = vmatprep.subr.mxu0 0.0
    %1447 = vmatpush1.msra.mxu0 0.0
    %1448 = vmatprep.subr.mxu0 0.0
    %1449 = vmatpush1.msra.mxu0 0.0
    %1450 = vmatprep.subr.mxu0 0.0
    %1451 = vmatpush1.msra.mxu0 0.0
    %1452 = vmatprep.subr.mxu0 0.0
    %1453 = vmatpush1.msra.mxu0 0.0
    %1454 = vmatprep.subr.mxu0 0.0
    %1455 = vmatpush1.msra.mxu0 0.0
    %1456 = vmatprep.subr.mxu0 0.0
    %1457 = vmatpush1.msra.mxu0 0.0
    %1458 = vmatprep.subr.mxu0 0.0
    %1459 = vmatpush1.msra.mxu0 0.0
    %1460 = vmatprep.subr.mxu0 0.0
    %1461 = vmatpush1.msra.mxu0 0.0
    %1462 = vmatprep.subr.mxu0 0.0
    %1463 = vmatpush1.msra.mxu0 0.0
    %1464 = vmatprep.subr.mxu0 0.0
    %1465 = vmatpush1.msra.mxu0 0.0
    %1466 = vmatprep.subr.mxu0 0.0
    %1467 = vmatpush1.msra.mxu0 0.0
    %1468 = vmatprep.subr.mxu0 0.0
    %1469 = vmatpush1.msra.mxu0 0.0
    %1470 = vmatprep.subr.mxu0 0.0
    %1471 = vmatpush1.msra.mxu0 0.0
    %1472 = vmatprep.subr.mxu0 0.0
    %1473 = vmatpush1.msra.mxu0 0.0
    %1474 = vmatprep.subr.mxu0 0.0
    %1475 = vmatpush1.msra.mxu0 0.0
    %1476 = vmatprep.subr.mxu0 0.0
    %1477 = vmatpush1.msra.mxu0 0.0
    %1478 = vmatprep.subr.mxu0 0.0
    %1479 = vmatpush1.msra.mxu0 0.0
    %1480 = vmatprep.subr.mxu0 0.0
    %1481 = vmatpush1.msra.mxu0 0.0
    %1482 = vmatprep.subr.mxu0 0.0
    %1483 = vmatpush1.msra.mxu0 0.0
    %1484 = vmatprep.subr.mxu0 0.0
    %1485 = vmatpush1.msra.mxu0 0.0
    %1486 = vmatprep.mubr.f32.mxu0 0.0
    %1487 = vmatmul.mubr.f32.gmra.mrb[0].mxu0 %v1420
    %v1488 = vpop.f32.mrb[0].mxu0
    %v1489 = vadd.f32 0.0, %v1488
    %v1490 = vpop.f32.mrb[0].mxu0
    %1491 = vdwg.mxu0
    %v1493 = vrot.slane %v1489, 2
    %v1495 = vadd.f32 %v1100, %v1493
    %v1496 = vxor.u32 %v1495, 2147483648
    %v1497 = vmul.f32 %v1496, 1.442695
    %v1498 = vpow.pop %v1497
    %v1499 = vadd.f32 %v1498, 1.0
    %v1500 = vrcp.pop %v1499
    %v1501 = vmul.f32 1.0, %v1500
    %v1502 = vtanh.pop %v1495
    %v1504 = vrot.slane %v1409, 6
    %v1506 = vmul.f32 %v1501, %v1504
    %1508 = vrot.lane.b32.xlu0 %v1502, 32
    %v1509 = vpop.permute.xlu0 %1508
    %v1511 = vmul.f32 %v1501, %v1509
    %1513 = vrot.lane.b32.xlu0 %v1511, 32
    %v1514 = vpop.permute.xlu0 %1513
    %v1516 = vadd.f32 %v1506, %v1514
    %v1517 = vtanh.pop %v1516
    %1519 = vrot.lane.b32.xlu0 %v1517, 32
    %v1520 = vpop.permute.xlu0 %1519
    %v1522 = vmul.f32 %v1501, %v1520
    %v1524 = vrot.slane %v1522, 6
    %1525 = vrot.lane.b32.xlu0 %v1524, 64
    %v1526 = vpop.permute.xlu0 %1525
    %v1527 = vsel %vm156, %v1526, 0
    %1529 = vmatprep.subr.mxu0 0.0
    %1530 = vmatpush1.msra.mxu0 %v1012
    %1531 = vmatprep.subr.mxu0 0.0
    %1532 = vmatpush1.msra.mxu0 %v1013
    %1533 = vmatprep.subr.mxu0 0.0
    %1534 = vmatpush1.msra.mxu0 %v1014
    %1535 = vmatprep.subr.mxu0 0.0
    %1536 = vmatpush1.msra.mxu0 %v1015
    %1537 = vmatprep.subr.mxu0 0.0
    %1538 = vmatpush1.msra.mxu0 0.0
    %1539 = vmatprep.subr.mxu0 0.0
    %1540 = vmatpush1.msra.mxu0 0.0
    %1541 = vmatprep.subr.mxu0 0.0
    %1542 = vmatpush1.msra.mxu0 0.0
    %1543 = vmatprep.subr.mxu0 0.0
    %1544 = vmatpush1.msra.mxu0 0.0
    %1545 = vmatprep.subr.mxu0 0.0
    %1546 = vmatpush1.msra.mxu0 0.0
    %1547 = vmatprep.subr.mxu0 0.0
    %1548 = vmatpush1.msra.mxu0 0.0
    %1549 = vmatprep.subr.mxu0 0.0
    %1550 = vmatpush1.msra.mxu0 0.0
    %1551 = vmatprep.subr.mxu0 0.0
    %1552 = vmatpush1.msra.mxu0 0.0
    %1553 = vmatprep.subr.mxu0 0.0
    %1554 = vmatpush1.msra.mxu0 0.0
    %1555 = vmatprep.subr.mxu0 0.0
    %1556 = vmatpush1.msra.mxu0 0.0
    %1557 = vmatprep.subr.mxu0 0.0
    %1558 = vmatpush1.msra.mxu0 0.0
    %1559 = vmatprep.subr.mxu0 0.0
    %1560 = vmatpush1.msra.mxu0 0.0
    %1561 = vmatprep.subr.mxu0 0.0
    %1562 = vmatpush1.msra.mxu0 0.0
    %1563 = vmatprep.subr.mxu0 0.0
    %1564 = vmatpush1.msra.mxu0 0.0
    %1565 = vmatprep.subr.mxu0 0.0
    %1566 = vmatpush1.msra.mxu0 0.0
    %1567 = vmatprep.subr.mxu0 0.0
    %1568 = vmatpush1.msra.mxu0 0.0
    %1569 = vmatprep.subr.mxu0 0.0
    %1570 = vmatpush1.msra.mxu0 0.0
    %1571 = vmatprep.subr.mxu0 0.0
    %1572 = vmatpush1.msra.mxu0 0.0
    %1573 = vmatprep.subr.mxu0 0.0
    %1574 = vmatpush1.msra.mxu0 0.0
    %1575 = vmatprep.subr.mxu0 0.0
    %1576 = vmatpush1.msra.mxu0 0.0
    %1577 = vmatprep.subr.mxu0 0.0
    %1578 = vmatpush1.msra.mxu0 0.0
    %1579 = vmatprep.subr.mxu0 0.0
    %1580 = vmatpush1.msra.mxu0 0.0
    %1581 = vmatprep.subr.mxu0 0.0
    %1582 = vmatpush1.msra.mxu0 0.0
    %1583 = vmatprep.subr.mxu0 0.0
    %1584 = vmatpush1.msra.mxu0 0.0
    %1585 = vmatprep.subr.mxu0 0.0
    %1586 = vmatpush1.msra.mxu0 0.0
    %1587 = vmatprep.subr.mxu0 0.0
    %1588 = vmatpush1.msra.mxu0 0.0
    %1589 = vmatprep.subr.mxu0 0.0
    %1590 = vmatpush1.msra.mxu0 0.0
    %1591 = vmatprep.subr.mxu0 0.0
    %1592 = vmatpush1.msra.mxu0 0.0
    %1593 = vmatprep.mubr.f32.mxu0 0.0
    %1594 = vmatmul.mubr.f32.gmra.mrb[0].mxu0 %v1527
    %v1595 = vpop.f32.mrb[0].mxu0
    %v1596 = vadd.f32 0.0, %v1595
    %v1597 = vpop.f32.mrb[0].mxu0
    %1598 = vdwg.mxu0
    %v1599 = vadd.f32 %v1105, %v1596
    %v1600 = vxor.u32 %v1599, 2147483648
    %v1601 = vmul.f32 %v1600, 1.442695
    %v1602 = vpow.pop %v1601
    %v1603 = vadd.f32 %v1602, 1.0
    %v1604 = vrcp.pop %v1603
    %v1605 = vmul.f32 1.0, %v1604
    %v1606 = vtanh.pop %v1599
    %v1608 = vrot.slane %v1516, 6
    %v1610 = vmul.f32 %v1605, %v1608
    %1612 = vrot.lane.b32.xlu0 %v1606, 32
    %v1613 = vpop.permute.xlu0 %1612
    %v1615 = vmul.f32 %v1605, %v1613
    %1617 = vrot.lane.b32.xlu0 %v1615, 32
    %v1618 = vpop.permute.xlu0 %1617
    %v1620 = vadd.f32 %v1610, %v1618
    %v1621 = vtanh.pop %v1620
    %1623 = vrot.lane.b32.xlu0 %v1621, 32
    %v1624 = vpop.permute.xlu0 %1623
    %v1626 = vmul.f32 %v1605, %v1624
    %1628 = vrot.lane.b32.xlu0 %v1626, 64
    %v1629 = vpop.permute.xlu0 %1628
    %v1630 = vsel %vm156, %v1629, 0
    %1632 = vmatprep.subr.mxu0 0.0
    %1633 = vmatpush1.msra.mxu0 %v1012
    %1634 = vmatprep.subr.mxu0 0.0
    %1635 = vmatpush1.msra.mxu0 %v1013
    %1636 = vmatprep.subr.mxu0 0.0
    %1637 = vmatpush1.msra.mxu0 %v1014
    %1638 = vmatprep.subr.mxu0 0.0
    %1639 = vmatpush1.msra.mxu0 %v1015
    %1640 = vmatprep.subr.mxu0 0.0
    %1641 = vmatpush1.msra.mxu0 0.0
    %1642 = vmatprep.subr.mxu0 0.0
    %1643 = vmatpush1.msra.mxu0 0.0
    %1644 = vmatprep.subr.mxu0 0.0
    %1645 = vmatpush1.msra.mxu0 0.0
    %1646 = vmatprep.subr.mxu0 0.0
    %1647 = vmatpush1.msra.mxu0 0.0
    %1648 = vmatprep.subr.mxu0 0.0
    %1649 = vmatpush1.msra.mxu0 0.0
    %1650 = vmatprep.subr.mxu0 0.0
    %1651 = vmatpush1.msra.mxu0 0.0
    %1652 = vmatprep.subr.mxu0 0.0
    %1653 = vmatpush1.msra.mxu0 0.0
    %1654 = vmatprep.subr.mxu0 0.0
    %1655 = vmatpush1.msra.mxu0 0.0
    %1656 = vmatprep.subr.mxu0 0.0
    %1657 = vmatpush1.msra.mxu0 0.0
    %1658 = vmatprep.subr.mxu0 0.0
    %1659 = vmatpush1.msra.mxu0 0.0
    %1660 = vmatprep.subr.mxu0 0.0
    %1661 = vmatpush1.msra.mxu0 0.0
    %1662 = vmatprep.subr.mxu0 0.0
    %1663 = vmatpush1.msra.mxu0 0.0
    %1664 = vmatprep.subr.mxu0 0.0
    %1665 = vmatpush1.msra.mxu0 0.0
    %1666 = vmatprep.subr.mxu0 0.0
    %1667 = vmatpush1.msra.mxu0 0.0
    %1668 = vmatprep.subr.mxu0 0.0
    %1669 = vmatpush1.msra.mxu0 0.0
    %1670 = vmatprep.subr.mxu0 0.0
    %1671 = vmatpush1.msra.mxu0 0.0
    %1672 = vmatprep.subr.mxu0 0.0
    %1673 = vmatpush1.msra.mxu0 0.0
    %1674 = vmatprep.subr.mxu0 0.0
    %1675 = vmatpush1.msra.mxu0 0.0
    %1676 = vmatprep.subr.mxu0 0.0
    %1677 = vmatpush1.msra.mxu0 0.0
    %1678 = vmatprep.subr.mxu0 0.0
    %1679 = vmatpush1.msra.mxu0 0.0
    %1680 = vmatprep.subr.mxu0 0.0
    %1681 = vmatpush1.msra.mxu0 0.0
    %1682 = vmatprep.subr.mxu0 0.0
    %1683 = vmatpush1.msra.mxu0 0.0
    %1684 = vmatprep.subr.mxu0 0.0
    %1685 = vmatpush1.msra.mxu0 0.0
    %1686 = vmatprep.subr.mxu0 0.0
    %1687 = vmatpush1.msra.mxu0 0.0
    %1688 = vmatprep.subr.mxu0 0.0
    %1689 = vmatpush1.msra.mxu0 0.0
    %1690 = vmatprep.subr.mxu0 0.0
    %1691 = vmatpush1.msra.mxu0 0.0
    %1692 = vmatprep.subr.mxu0 0.0
    %1693 = vmatpush1.msra.mxu0 0.0
    %1694 = vmatprep.subr.mxu0 0.0
    %1695 = vmatpush1.msra.mxu0 0.0
    %1696 = vmatprep.mubr.f32.mxu0 0.0
    %1697 = vmatmul.mubr.f32.gmra.mrb[0].mxu0 %v1630
    %v1698 = vpop.f32.mrb[0].mxu0
    %v1699 = vadd.f32 0.0, %v1698
    %v1700 = vpop.f32.mrb[0].mxu0
    %1701 = vdwg.mxu0
    %v1703 = vrot.slane %v1699, 6
    %v1705 = vadd.f32 %v1105, %v1703
    %v1706 = vxor.u32 %v1705, 2147483648
    %v1707 = vmul.f32 %v1706, 1.442695
    %v1708 = vpow.pop %v1707
    %v1709 = vadd.f32 %v1708, 1.0
    %v1710 = vrcp.pop %v1709
    %v1711 = vmul.f32 1.0, %v1710
    %v1712 = vtanh.pop %v1705
    %v1714 = vrot.slane %v1620, 6
    %v1716 = vmul.f32 %v1711, %v1714
    %1718 = vrot.lane.b32.xlu0 %v1712, 32
    %v1719 = vpop.permute.xlu0 %1718
    %v1721 = vmul.f32 %v1711, %v1719
    %1723 = vrot.lane.b32.xlu0 %v1721, 32
    %v1724 = vpop.permute.xlu0 %1723
    %v1726 = vadd.f32 %v1716, %v1724
    %v1727 = vtanh.pop %v1726
    %1729 = vrot.lane.b32.xlu0 %v1727, 32
    %v1730 = vpop.permute.xlu0 %1729
    %v1732 = vmul.f32 %v1711, %v1730
    %v1734 = vrot.slane %v1732, 2
    %1735 = vrot.lane.b32.xlu0 %v1734, 64
    %v1736 = vpop.permute.xlu0 %1735
    %v1737 = vsel %vm156, %v1736, 0
    %1739 = vmatprep.subr.mxu0 0.0
    %1740 = vmatpush1.msra.mxu0 %v1012
    %1741 = vmatprep.subr.mxu0 0.0
    %1742 = vmatpush1.msra.mxu0 %v1013
    %1743 = vmatprep.subr.mxu0 0.0
    %1744 = vmatpush1.msra.mxu0 %v1014
    %1745 = vmatprep.subr.mxu0 0.0
    %1746 = vmatpush1.msra.mxu0 %v1015
    %1747 = vmatprep.subr.mxu0 0.0
    %1748 = vmatpush1.msra.mxu0 0.0
    %1749 = vmatprep.subr.mxu0 0.0
    %1750 = vmatpush1.msra.mxu0 0.0
    %1751 = vmatprep.subr.mxu0 0.0
    %1752 = vmatpush1.msra.mxu0 0.0
    %1753 = vmatprep.subr.mxu0 0.0
    %1754 = vmatpush1.msra.mxu0 0.0
    %1755 = vmatprep.subr.mxu0 0.0
    %1756 = vmatpush1.msra.mxu0 0.0
    %1757 = vmatprep.subr.mxu0 0.0
    %1758 = vmatpush1.msra.mxu0 0.0
    %1759 = vmatprep.subr.mxu0 0.0
    %1760 = vmatpush1.msra.mxu0 0.0
    %1761 = vmatprep.subr.mxu0 0.0
    %1762 = vmatpush1.msra.mxu0 0.0
    %1763 = vmatprep.subr.mxu0 0.0
    %1764 = vmatpush1.msra.mxu0 0.0
    %1765 = vmatprep.subr.mxu0 0.0
    %1766 = vmatpush1.msra.mxu0 0.0
    %1767 = vmatprep.subr.mxu0 0.0
    %1768 = vmatpush1.msra.mxu0 0.0
    %1769 = vmatprep.subr.mxu0 0.0
    %1770 = vmatpush1.msra.mxu0 0.0
    %1771 = vmatprep.subr.mxu0 0.0
    %1772 = vmatpush1.msra.mxu0 0.0
    %1773 = vmatprep.subr.mxu0 0.0
    %1774 = vmatpush1.msra.mxu0 0.0
    %1775 = vmatprep.subr.mxu0 0.0
    %1776 = vmatpush1.msra.mxu0 0.0
    %1777 = vmatprep.subr.mxu0 0.0
    %1778 = vmatpush1.msra.mxu0 0.0
    %1779 = vmatprep.subr.mxu0 0.0
    %1780 = vmatpush1.msra.mxu0 0.0
    %1781 = vmatprep.subr.mxu0 0.0
    %1782 = vmatpush1.msra.mxu0 0.0
    %1783 = vmatprep.subr.mxu0 0.0
    %1784 = vmatpush1.msra.mxu0 0.0
    %1785 = vmatprep.subr.mxu0 0.0
    %1786 = vmatpush1.msra.mxu0 0.0
    %1787 = vmatprep.subr.mxu0 0.0
    %1788 = vmatpush1.msra.mxu0 0.0
    %1789 = vmatprep.subr.mxu0 0.0
    %1790 = vmatpush1.msra.mxu0 0.0
    %1791 = vmatprep.subr.mxu0 0.0
    %1792 = vmatpush1.msra.mxu0 0.0
    %1793 = vmatprep.subr.mxu0 0.0
    %1794 = vmatpush1.msra.mxu0 0.0
    %1795 = vmatprep.subr.mxu0 0.0
    %1796 = vmatpush1.msra.mxu0 0.0
    %1797 = vmatprep.subr.mxu0 0.0
    %1798 = vmatpush1.msra.mxu0 0.0
    %1799 = vmatprep.subr.mxu0 0.0
    %1800 = vmatpush1.msra.mxu0 0.0
    %1801 = vmatprep.subr.mxu0 0.0
    %1802 = vmatpush1.msra.mxu0 0.0
    %1803 = vmatprep.mubr.f32.mxu0 0.0
    %1804 = vmatmul.mubr.f32.gmra.mrb[0].mxu0 %v1737
    %v1805 = vpop.f32.mrb[0].mxu0
    %v1806 = vadd.f32 0.0, %v1805
    %v1807 = vpop.f32.mrb[0].mxu0
    %1808 = vdwg.mxu0
    %v1810 = vrot.slane %v1806, 4
    %v1812 = vadd.f32 %v1105, %v1810
    %v1813 = vxor.u32 %v1812, 2147483648
    %v1814 = vmul.f32 %v1813, 1.442695
    %v1815 = vpow.pop %v1814
    %v1816 = vadd.f32 %v1815, 1.0
    %v1817 = vrcp.pop %v1816
    %v1818 = vmul.f32 1.0, %v1817
    %v1819 = vtanh.pop %v1812
    %v1821 = vrot.slane %v1726, 6
    %v1823 = vmul.f32 %v1818, %v1821
    %1825 = vrot.lane.b32.xlu0 %v1819, 32
    %v1826 = vpop.permute.xlu0 %1825
    %v1828 = vmul.f32 %v1818, %v1826
    %1830 = vrot.lane.b32.xlu0 %v1828, 32
    %v1831 = vpop.permute.xlu0 %1830
    %v1833 = vadd.f32 %v1823, %v1831
    %v1834 = vtanh.pop %v1833
    %1836 = vrot.lane.b32.xlu0 %v1834, 32
    %v1837 = vpop.permute.xlu0 %1836
    %v1839 = vmul.f32 %v1818, %v1837
    %v1841 = vrot.slane %v1839, 4
    %1842 = vrot.lane.b32.xlu0 %v1841, 64
    %v1843 = vpop.permute.xlu0 %1842
    %v1844 = vsel %vm156, %v1843, 0
    %1846 = vmatprep.subr.mxu0 0.0
    %1847 = vmatpush1.msra.mxu0 %v1012
    %1848 = vmatprep.subr.mxu0 0.0
    %1849 = vmatpush1.msra.mxu0 %v1013
    %1850 = vmatprep.subr.mxu0 0.0
    %1851 = vmatpush1.msra.mxu0 %v1014
    %1852 = vmatprep.subr.mxu0 0.0
    %1853 = vmatpush1.msra.mxu0 %v1015
    %1854 = vmatprep.subr.mxu0 0.0
    %1855 = vmatpush1.msra.mxu0 0.0
    %1856 = vmatprep.subr.mxu0 0.0
    %1857 = vmatpush1.msra.mxu0 0.0
    %1858 = vmatprep.subr.mxu0 0.0
    %1859 = vmatpush1.msra.mxu0 0.0
    %1860 = vmatprep.subr.mxu0 0.0
    %1861 = vmatpush1.msra.mxu0 0.0
    %1862 = vmatprep.subr.mxu0 0.0
    %1863 = vmatpush1.msra.mxu0 0.0
    %1864 = vmatprep.subr.mxu0 0.0
    %1865 = vmatpush1.msra.mxu0 0.0
    %1866 = vmatprep.subr.mxu0 0.0
    %1867 = vmatpush1.msra.mxu0 0.0
    %1868 = vmatprep.subr.mxu0 0.0
    %1869 = vmatpush1.msra.mxu0 0.0
    %1870 = vmatprep.subr.mxu0 0.0
    %1871 = vmatpush1.msra.mxu0 0.0
    %1872 = vmatprep.subr.mxu0 0.0
    %1873 = vmatpush1.msra.mxu0 0.0
    %1874 = vmatprep.subr.mxu0 0.0
    %1875 = vmatpush1.msra.mxu0 0.0
    %1876 = vmatprep.subr.mxu0 0.0
    %1877 = vmatpush1.msra.mxu0 0.0
    %1878 = vmatprep.subr.mxu0 0.0
    %1879 = vmatpush1.msra.mxu0 0.0
    %1880 = vmatprep.subr.mxu0 0.0
    %1881 = vmatpush1.msra.mxu0 0.0
    %1882 = vmatprep.subr.mxu0 0.0
    %1883 = vmatpush1.msra.mxu0 0.0
    %1884 = vmatprep.subr.mxu0 0.0
    %1885 = vmatpush1.msra.mxu0 0.0
    %1886 = vmatprep.subr.mxu0 0.0
    %1887 = vmatpush1.msra.mxu0 0.0
    %1888 = vmatprep.subr.mxu0 0.0
    %1889 = vmatpush1.msra.mxu0 0.0
    %1890 = vmatprep.subr.mxu0 0.0
    %1891 = vmatpush1.msra.mxu0 0.0
    %1892 = vmatprep.subr.mxu0 0.0
    %1893 = vmatpush1.msra.mxu0 0.0
    %1894 = vmatprep.subr.mxu0 0.0
    %1895 = vmatpush1.msra.mxu0 0.0
    %1896 = vmatprep.subr.mxu0 0.0
    %1897 = vmatpush1.msra.mxu0 0.0
    %1898 = vmatprep.subr.mxu0 0.0
    %1899 = vmatpush1.msra.mxu0 0.0
    %1900 = vmatprep.subr.mxu0 0.0
    %1901 = vmatpush1.msra.mxu0 0.0
    %1902 = vmatprep.subr.mxu0 0.0
    %1903 = vmatpush1.msra.mxu0 0.0
    %1904 = vmatprep.subr.mxu0 0.0
    %1905 = vmatpush1.msra.mxu0 0.0
    %1906 = vmatprep.subr.mxu0 0.0
    %1907 = vmatpush1.msra.mxu0 0.0
    %1908 = vmatprep.subr.mxu0 0.0
    %1909 = vmatpush1.msra.mxu0 0.0
    %1910 = vmatprep.mubr.f32.mxu0 0.0
    %1911 = vmatmul.mubr.f32.gmra.mrb[0].mxu0 %v1844
    %v1912 = vpop.f32.mrb[0].mxu0
    %v1913 = vadd.f32 0.0, %v1912
    %v1914 = vpop.f32.mrb[0].mxu0
    %1915 = vdwg.mxu0
    %v1917 = vrot.slane %v1913, 2
    %v1919 = vadd.f32 %v1105, %v1917
    %v1920 = vxor.u32 %v1919, 2147483648
    %v1921 = vmul.f32 %v1920, 1.442695
    %v1922 = vpow.pop %v1921
    %v1923 = vadd.f32 %v1922, 1.0
    %v1924 = vrcp.pop %v1923
    %v1925 = vmul.f32 1.0, %v1924
    %v1926 = vtanh.pop %v1919
    %v1928 = vrot.slane %v1833, 6
    %v1930 = vmul.f32 %v1925, %v1928
    %1932 = vrot.lane.b32.xlu0 %v1926, 32
    %v1933 = vpop.permute.xlu0 %1932
    %v1935 = vmul.f32 %v1925, %v1933
    %1937 = vrot.lane.b32.xlu0 %v1935, 32
    %v1938 = vpop.permute.xlu0 %1937
    %v1940 = vadd.f32 %v1930, %v1938
    %v1941 = vtanh.pop %v1940
    %1943 = vrot.lane.b32.xlu0 %v1941, 32
    %v1944 = vpop.permute.xlu0 %1943
    %v1946 = vmul.f32 %v1925, %v1944
    %v1947 = vld [vmem:[%s7] sm:$0xff]
    %v1948 = vld [vmem:[%s7 + $0x8] sm:$0xff]
    %v1949 = vld [vmem:[%s7 + $0x10] sm:$0xff]
    %v1950 = vld [vmem:[%s7 + $0x18] sm:$0xff]
    %v1951 = vld [vmem:[#allocation5] sm:$0x1]
    %v1953 = vlaneseq
    %v1954 = vshrl.u32 %v1953, 7
    %v1955 = vsub.s32 0, %v1954
    %v1956 = vrot.slane %v1951, %v1955
    %v1959 = vrot.slane %v1946, 6
    %1960 = vrot.lane.b32.xlu0 %v1959, 64
    %v1961 = vpop.permute.xlu0 %1960
    %v1962 = vsel %vm156, %v1961, 0
    %1964 = vmatprep.subr.mxu0 0.0
    %1965 = vmatpush1.msra.mxu0 %v1947
    %1966 = vmatprep.subr.mxu0 0.0
    %1967 = vmatpush1.msra.mxu0 %v1948
    %1968 = vmatprep.subr.mxu0 0.0
    %1969 = vmatpush1.msra.mxu0 %v1949
    %1970 = vmatprep.subr.mxu0 0.0
    %1971 = vmatpush1.msra.mxu0 %v1950
    %1972 = vmatprep.subr.mxu0 0.0
    %1973 = vmatpush1.msra.mxu0 0.0
    %1974 = vmatprep.subr.mxu0 0.0
    %1975 = vmatpush1.msra.mxu0 0.0
    %1976 = vmatprep.subr.mxu0 0.0
    %1977 = vmatpush1.msra.mxu0 0.0
    %1978 = vmatprep.subr.mxu0 0.0
    %1979 = vmatpush1.msra.mxu0 0.0
    %1980 = vmatprep.subr.mxu0 0.0
    %1981 = vmatpush1.msra.mxu0 0.0
    %1982 = vmatprep.subr.mxu0 0.0
    %1983 = vmatpush1.msra.mxu0 0.0
    %1984 = vmatprep.subr.mxu0 0.0
    %1985 = vmatpush1.msra.mxu0 0.0
    %1986 = vmatprep.subr.mxu0 0.0
    %1987 = vmatpush1.msra.mxu0 0.0
    %1988 = vmatprep.subr.mxu0 0.0
    %1989 = vmatpush1.msra.mxu0 0.0
    %1990 = vmatprep.subr.mxu0 0.0
    %1991 = vmatpush1.msra.mxu0 0.0
    %1992 = vmatprep.subr.mxu0 0.0
    %1993 = vmatpush1.msra.mxu0 0.0
    %1994 = vmatprep.subr.mxu0 0.0
    %1995 = vmatpush1.msra.mxu0 0.0
    %1996 = vmatprep.subr.mxu0 0.0
    %1997 = vmatpush1.msra.mxu0 0.0
    %1998 = vmatprep.subr.mxu0 0.0
    %1999 = vmatpush1.msra.mxu0 0.0
    %2000 = vmatprep.subr.mxu0 0.0
    %2001 = vmatpush1.msra.mxu0 0.0
    %2002 = vmatprep.subr.mxu0 0.0
    %2003 = vmatpush1.msra.mxu0 0.0
    %2004 = vmatprep.subr.mxu0 0.0
    %2005 = vmatpush1.msra.mxu0 0.0
    %2006 = vmatprep.subr.mxu0 0.0
    %2007 = vmatpush1.msra.mxu0 0.0
    %2008 = vmatprep.subr.mxu0 0.0
    %2009 = vmatpush1.msra.mxu0 0.0
    %2010 = vmatprep.subr.mxu0 0.0
    %2011 = vmatpush1.msra.mxu0 0.0
    %2012 = vmatprep.subr.mxu0 0.0
    %2013 = vmatpush1.msra.mxu0 0.0
    %2014 = vmatprep.subr.mxu0 0.0
    %2015 = vmatpush1.msra.mxu0 0.0
    %2016 = vmatprep.subr.mxu0 0.0
    %2017 = vmatpush1.msra.mxu0 0.0
    %2018 = vmatprep.subr.mxu0 0.0
    %2019 = vmatpush1.msra.mxu0 0.0
    %2020 = vmatprep.subr.mxu0 0.0
    %2021 = vmatpush1.msra.mxu0 0.0
    %2022 = vmatprep.subr.mxu0 0.0
    %2023 = vmatpush1.msra.mxu0 0.0
    %2024 = vmatprep.subr.mxu0 0.0
    %2025 = vmatpush1.msra.mxu0 0.0
    %2026 = vmatprep.subr.mxu0 0.0
    %2027 = vmatpush1.msra.mxu0 0.0
    %2028 = vmatprep.mubr.f32.mxu0 0.0
    %2029 = vmatmul.mubr.f32.gmra.mrb[0].mxu0 %v1962
    %v2030 = vpop.f32.mrb[0].mxu0
    %v2031 = vadd.f32 %v1956, %v2030
    %v2032 = vpop.f32.mrb[0].mxu0
    %2033 = vdwg.mxu0
    %vm2034 = vcmask 25600
    %2035 = vst.msk [vmem:[#allocation7] sm:$0x3] %vm2034, %v2031
    // Predicated region
    $region46: #{model_forward.1} parent=1 // pred_check
      _
    $region47: #{model_forward.1} parent=1 // pred_check_branch
      %2037 = sbr.rel (0) target = $region49
    $region48: #{model_forward.1} parent=1 // pred_region
      %s2039 = ssub.s32 32, 32
      %2040 = vsyncadd [#allocation4], %s2039
      %s2042 = sshll.u32 [#allocation7], 4
      %s2043 = int_to_ptr.vmem [resolvable:$true] %s2042
      %2045 = dma.vmem_to_hbm [thread:$0]  %s2043, 32, %s9, [#allocation4]
    $region49: #{model_forward.1} parent=1 // pred_fallthru
      _
    // Predicated region
    $region50: #{model_forward.1} parent=1 // pred_check
      _
    $region51: #{model_forward.1} parent=1 // pred_check_branch
      %2047 = sbr.rel (0) target = $region53
    $region52: #{model_forward.1} parent=1 // pred_region
      %2048 = dma.done [#allocation4], 32
    $region53: #{model_forward.1} parent=1 // pred_fallthru
      _
    %2049 = vsyncpa [#allocation3], 1
    %2050 = vsyncpa [#allocation6], 1
    %2051 = vsyncpa [#allocation4], 1

</llo_original>
